<compile_context>
chip_gen: v7x
topology: tpu7x:2x2x1
jax: 0.10.0
libtpu: 0.0.40
codegen_flags: <defaults>
</compile_context>

<pallas_src>
import jax
import jax.numpy as jnp
import numpy as np
from jax import lax
from jax.experimental import pallas as pl
from jax.experimental.pallas import tpu as pltpu


# ----------------------------------------------------------------------------
# Phase-folded parameters.
#
# For output pixel (2*yo+py, 2*xo+px) the conv over the nearest-upsampled,
# zero-padded image reads original rows yo + floor((py+dy-1)/2), cols
# xo + floor((px+dx-1)/2) (with a 1-px zero border on the original image).
# Folding the taps per (phase, original-offset) gives a 3x3 kernel applied at
# ORIGINAL resolution with 4*Cout output channels (the 2x2 sub-pixel phases).
# ----------------------------------------------------------------------------
def _phase_folded_params(weight, bias):
    """weight: (Cout, Cin, 3, 3) PyTorch layout; bias: (Cout,).

    Returns:
      w_taps: (9, Cin, 4*Cout) bf16 — tap k = 3*ty + tx; N ordered (phase, co)
      b_exp : (1, 4*Cout) f32     — phase-tiled bias
    """
    Cout, Cin, _, _ = weight.shape
    w_hwio = jnp.transpose(weight, (2, 3, 1, 0)).astype(jnp.float32)  # (3,3,Cin,Cout)
    w_exp = jnp.zeros((3, 3, Cin, 4, Cout), dtype=jnp.float32)
    for py in range(2):
        for px in range(2):
            ph = py * 2 + px
            for dy in range(3):
                ty = (py + dy - 1) // 2 + 1          # original-row offset + 1
                for dx in range(3):
                    tx = (px + dx - 1) // 2 + 1      # original-col offset + 1
                    w_exp = w_exp.at[ty, tx, :, ph, :].add(w_hwio[dy, dx])
    w_taps = w_exp.reshape(9, Cin, 4 * Cout).astype(jnp.bfloat16)
    b_exp = jnp.tile(bias.reshape(1, Cout).astype(jnp.float32), (1, 4))
    return w_taps, b_exp


# ----------------------------------------------------------------------------
# Kernel
# ----------------------------------------------------------------------------
def _upsample_conv_kernel(x_ref, w_ref, b_ref, o_ref):
    """Fused nearest-2x-upsample + 3x3 conv (phase form) for one row tile.

    x_ref: (1, 1, TH+2, W+2, Cin) bf16  row tile including its 2 halo rows
    w_ref: (9, Cin, 4*Cout)       bf16  phase-folded weights, tap-major
    b_ref: (1, 4*Cout)            f32   phase-tiled bias
    o_ref: (1, TH*W, 4*Cout)      f32   output (phases packed on the lane dim)
    """
    TH = x_ref.shape[2] - 2
    W = x_ref.shape[3] - 2
    Cin = x_ref.shape[4]

    # Per-tap accumulation: 9 matmuls (TH*W, Cin) @ (Cin, 4*Cout), f32 accum.
    # No im2col slab is materialized; the ty-shift is a free leading-dim
    # offset and the tx-shift is cheap sublane (XLU) work hidden under the MXU.
    acc = None
    for ty in range(3):
        for tx in range(3):
            k = 3 * ty + tx
            tap = x_ref[0, 0, ty:ty + TH, tx:tx + W, :].reshape(TH * W, Cin)
            contrib = jnp.dot(tap, w_ref[k], preferred_element_type=jnp.float32)
            acc = contrib if acc is None else acc + contrib

    o_ref[0] = (acc + b_ref[...]).astype(o_ref.dtype)


# ----------------------------------------------------------------------------
# VMEM budgeting / row-tile selection
# ----------------------------------------------------------------------------
def _vmem_limit_bytes():
    """Generation-aware VMEM limit: ~96 MiB on v5e/v6e (128 MiB), ~40 MiB on
    v7x (64 MiB).  Falls back to a 128 MiB assumption if the query fails."""
    cap = 128 * 1024 * 1024
    try:
        cap = int(pltpu.get_tpu_info().vmem_capacity_bytes)
    except Exception:
        pass
    return max(16 << 20, min(int(cap * 3 // 4), cap - (24 << 20)))


def _pick_row_tile(H, W, Cin, Cout, budget_bytes):
    """Largest row tile TH dividing H whose per-step working set fits the
    budget; prefers leaving >=2 row tiles so megacore has parallel work."""
    N = 4 * Cout

    def cost(th):
        inp = 2 * (th + 2) * (W + 2) * Cin * 2        # double-buffered bf16 input
        out = 2 * th * W * N * 4                      # double-buffered f32 output
        wgt = 2 * 9 * Cin * N * 2 + 2 * N * 4         # resident weights + bias
        tmp = 2 * th * W * N * 4 + th * W * Cin * 2   # f32 acc + live tap/contrib
        return inp + out + wgt + tmp

    def legal(th):
        # output block second-to-last dim is TH*W: multiple of 8 or full extent
        return H % th == 0 and ((th * W) % 8 == 0 or th == H)

    cands = [th for th in range(1, H + 1) if legal(th) and cost(th) <= budget_bytes]
    if not cands:
        fallback = [th for th in range(1, H + 1) if legal(th)]
        return min(fallback) if fallback else H
    multi = [th for th in cands if H // th >= 2]
    return max(multi) if multi else max(cands)


# ----------------------------------------------------------------------------
# Wrapper: PyTorch-equivalent forward (NCHW in / NCHW out)
# ----------------------------------------------------------------------------
def upsample_forward(x_nchw, weight, bias):
    """Equivalent of:
         x = F.interpolate(x, scale_factor=2, mode='nearest')
         x = Conv2d(ch, ch, 3, padding=1)(x)
    x_nchw: (B, C, H, W) f32; weight: (Cout, Cin, 3, 3); bias: (Cout,)
    returns (B, Cout, 2H, 2W) f32
    """
    B, Cin, H, W = x_nchw.shape
    Cout = weight.shape[0]
    N = 4 * Cout

    vmem_limit = _vmem_limit_bytes()
    TH = _pick_row_tile(H, W, Cin, Cout, int(vmem_limit * 0.8))
    nT = H // TH

    # Pack each row tile WITH its 2 halo rows (original resolution only; the
    # upsample + conv-pad are fused in-kernel).  This is an input-sized gather
    # (~16x smaller than the f32 output), and it removes both the oversized
    # halo BlockSpec and any in-kernel staging copy.
    x_nhwc = jnp.transpose(x_nchw, (0, 2, 3, 1)).astype(jnp.bfloat16)
    x_pad = jnp.pad(x_nhwc, ((0, 0), (1, 1), (1, 1), (0, 0)))     # (B, H+2, W+2, Cin)
    row_idx = jnp.arange(nT)[:, None] * TH + jnp.arange(TH + 2)[None, :]
    x_tiles = x_pad[:, row_idx]                                   # (B, nT, TH+2, W+2, Cin)

    w_taps, b_exp = _phase_folded_params(weight, bias)

    flops = 2 * B * H * W * 9 * Cin * N
    bytes_accessed = (B * nT * (TH + 2) * (W + 2) * Cin * 2       # bf16 input tiles
                      + 9 * Cin * N * 2 + N * 4                   # weights + bias
                      + B * H * W * N * 4)                        # f32 output

    out_flat = pl.pallas_call(
        _upsample_conv_kernel,
        out_shape=jax.ShapeDtypeStruct((B, H * W, N), jnp.float32),
        grid_spec=pltpu.PrefetchScalarGridSpec(
            num_scalar_prefetch=0,
            grid=(B, nT),
            in_specs=[
                # row tile + halo rows, packed by the wrapper
                pl.BlockSpec((1, 1, TH + 2, W + 2, Cin),
                             lambda b, i: (b, i, 0, 0, 0)),
                # folded weights / bias: resident across the whole grid
                pl.BlockSpec((9, Cin, N), lambda b, i: (0, 0, 0)),
                pl.BlockSpec((1, N), lambda b, i: (0, 0)),
            ],
            out_specs=pl.BlockSpec((1, TH * W, N), lambda b, i: (b, i, 0)),
        ),
        compiler_params=pltpu.CompilerParams(
            dimension_semantics=("parallel", "parallel"),
            vmem_limit_bytes=vmem_limit,
        ),
        cost_estimate=pl.CostEstimate(flops=flops, transcendentals=0,
                                      bytes_accessed=bytes_accessed),
    )(x_tiles, w_taps, b_exp)

    # Module returns NCHW, so exactly one output transpose is unavoidable:
    # depth-to-space + NHWC->NCHW folded into this single transpose.
    out = out_flat.reshape(B, H, W, 2, 2, Cout)          # (b, yo, xo, py, px, co)
    out = jnp.transpose(out, (0, 5, 1, 3, 2, 4)).reshape(B, Cout, 2 * H, 2 * W)
    return out


# ----------------------------------------------------------------------------
# References
# ----------------------------------------------------------------------------
def _reference_f32(x_nchw, weight, bias):
    """Full-f32 PyTorch-semantics reference (interpolate + conv, lax path)."""
    x_nhwc = jnp.transpose(x_nchw, (0, 2, 3, 1))
    up = jnp.repeat(jnp.repeat(x_nhwc, 2, axis=1), 2, axis=2)
    w_hwio = jnp.transpose(weight, (2, 3, 1, 0))
    out = lax.conv_general_dilated(
        up, w_hwio, window_strides=(1, 1), padding="SAME",
        dimension_numbers=("NHWC", "HWIO", "NHWC"))
    out = out + bias[None, None, None, :]
    return jnp.transpose(out, (0, 3, 1, 2))


def _reference_matched(x_nchw, w_taps, b_exp, Cout):
    """Same math as the kernel (bf16 folded weights, f32 per-tap accumulation)
    in pure JAX — validates the Pallas tiling / halo / per-tap matmuls."""
    B, Cin, H, W = x_nchw.shape
    N = w_taps.shape[-1]
    xp = jnp.pad(jnp.transpose(x_nchw, (0, 2, 3, 1)).astype(jnp.bfloat16),
                 ((0, 0), (1, 1), (1, 1), (0, 0)))
    acc = jnp.zeros((B, H * W, N), jnp.float32)
    for ty in range(3):
        for tx in range(3):
            tap = xp[:, ty:ty + H, tx:tx + W, :].reshape(B, H * W, Cin)
            acc = acc + jnp.einsum("bmk,kn->bmn", tap, w_taps[3 * ty + tx],
                                   preferred_element_type=jnp.float32)
    acc = acc + b_exp
    out = acc.reshape(B, H, W, 2, 2, Cout)
    return jnp.transpose(out, (0, 5, 1, 3, 2, 4)).reshape(B, Cout, 2 * H, 2 * W)


if __name__ == "__main__":
    key = jax.random.PRNGKey(0)
    kx, kw, kb = jax.random.split(key, 3)

    B, C, H, W = 2, 4, 16, 16
    x = jax.random.normal(kx, (B, C, H, W), dtype=jnp.float32)
    weight = 0.1 * jax.random.normal(kw, (C, C, 3, 3), dtype=jnp.float32)
    bias = 0.1 * jax.random.normal(kb, (C,), dtype=jnp.float32)

    fwd = jax.jit(upsample_forward)
    out = jax.block_until_ready(fwd(x, weight, bias))
    assert out.shape == (B, C, 2 * H, 2 * W), out.shape

    # Tight check: identical math (bf16-quantized folded weights, f32 accum)
    # expressed in pure JAX.
    w_taps, b_exp = _phase_folded_params(weight, bias)
    ref_matched = jax.block_until_ready(_reference_matched(x, w_taps, b_exp, C))
    assert np.allclose(np.asarray(out), np.asarray(ref_matched),
                       atol=1e-4, rtol=1e-4)

    # Sanity check against the full-f32 module semantics; tolerance reflects
    # the intentional bf16 input/weight quantization (f32 accumulation).
    ref_f32 = jax.block_until_ready(_reference_f32(x, weight, bias))
    assert np.allclose(np.asarray(out), np.asarray(ref_f32),
                       atol=3e-2, rtol=3e-2)

    print("KERNEL_OK")
</pallas_src>

<mosaic_0001>
module attributes {stable_mosaic.version = 11 : i64} {
  func.func @_upsample_conv_kernel(%arg0: i32, %arg1: i32, %arg2: memref<1x1x10x18x4xbf16, #tpu.memory_space<vmem>>, %arg3: memref<9x4x16xbf16, #tpu.memory_space<vmem>>, %arg4: memref<1x16xf32, #tpu.memory_space<vmem>>, %arg5: memref<1x128x16xf32, #tpu.memory_space<vmem>>) attributes {dimension_semantics = [#tpu.dimension_semantics<parallel>, #tpu.dimension_semantics<parallel>], iteration_bounds = array<i64: 2, 2>, scalar_prefetch = 0 : i64, scratch_operands = 0 : i64, tpu.core_type = #tpu.core_type<tc>, window_params = [{transform_indices = @transform_0, window_bounds = array<i64: 1, 1, 10, 18, 4>}, {pipeline_mode = #tpu.pipeline_mode<synchronous>, transform_indices = @transform_1, window_bounds = array<i64: 9, 4, 16>}, {pipeline_mode = #tpu.pipeline_mode<synchronous>, transform_indices = @transform_2, window_bounds = array<i64: 1, 16>}, {transform_indices = @transform_3, window_bounds = array<i64: 1, 128, 16>}]} {
    %c0 = arith.constant 0 : index
    %c0_0 = arith.constant 0 : index
    %c0_1 = arith.constant 0 : index
    %c0_2 = arith.constant 0 : index
    %c0_3 = arith.constant 0 : index
    %0 = vector.load %arg2[%c0, %c0_0, %c0_1, %c0_2, %c0_3] : memref<1x1x10x18x4xbf16, #tpu.memory_space<vmem>>, vector<1x1x8x16x4xbf16>
    %1 = vector.shape_cast %0 : vector<1x1x8x16x4xbf16> to vector<8x16x4xbf16>
    %2 = vector.shape_cast %1 : vector<8x16x4xbf16> to vector<128x4xbf16>
    %c0_4 = arith.constant 0 : index
    %c0_5 = arith.constant 0 : index
    %c0_6 = arith.constant 0 : index
    %3 = vector.load %arg3[%c0_4, %c0_5, %c0_6] : memref<9x4x16xbf16, #tpu.memory_space<vmem>>, vector<1x4x16xbf16>
    %4 = vector.shape_cast %3 : vector<1x4x16xbf16> to vector<4x16xbf16>
    %cst = arith.constant dense<0.000000e+00> : vector<128x16xf32>
    %5 = tpu.matmul %2, %4, %cst {dimension_numbers = #tpu.dot_dimension_numbers<[1], [0], [0], [1], [0, 0, 1, 1], [], []>} : vector<128x4xbf16>, vector<4x16xbf16>, vector<128x16xf32> -> vector<128x16xf32>
    %c0_7 = arith.constant 0 : index
    %c0_8 = arith.constant 0 : index
    %c0_9 = arith.constant 0 : index
    %c1 = arith.constant 1 : index
    %c0_10 = arith.constant 0 : index
    %6 = vector.load %arg2[%c0_7, %c0_8, %c0_9, %c1, %c0_10] : memref<1x1x10x18x4xbf16, #tpu.memory_space<vmem>>, vector<1x1x8x16x4xbf16>
    %7 = vector.shape_cast %6 : vector<1x1x8x16x4xbf16> to vector<8x16x4xbf16>
    %8 = vector.shape_cast %7 : vector<8x16x4xbf16> to vector<128x4xbf16>
    %c1_11 = arith.constant 1 : index
    %c0_12 = arith.constant 0 : index
    %c0_13 = arith.constant 0 : index
    %9 = vector.load %arg3[%c1_11, %c0_12, %c0_13] : memref<9x4x16xbf16, #tpu.memory_space<vmem>>, vector<1x4x16xbf16>
    %10 = vector.shape_cast %9 : vector<1x4x16xbf16> to vector<4x16xbf16>
    %cst_14 = arith.constant dense<0.000000e+00> : vector<128x16xf32>
    %11 = tpu.matmul %8, %10, %cst_14 {dimension_numbers = #tpu.dot_dimension_numbers<[1], [0], [0], [1], [0, 0, 1, 1], [], []>} : vector<128x4xbf16>, vector<4x16xbf16>, vector<128x16xf32> -> vector<128x16xf32>
    %12 = arith.addf %5, %11 : vector<128x16xf32>
    %c0_15 = arith.constant 0 : index
    %c0_16 = arith.constant 0 : index
    %c0_17 = arith.constant 0 : index
    %c2 = arith.constant 2 : index
    %c0_18 = arith.constant 0 : index
    %13 = vector.load %arg2[%c0_15, %c0_16, %c0_17, %c2, %c0_18] : memref<1x1x10x18x4xbf16, #tpu.memory_space<vmem>>, vector<1x1x8x16x4xbf16>
    %14 = vector.shape_cast %13 : vector<1x1x8x16x4xbf16> to vector<8x16x4xbf16>
    %15 = vector.shape_cast %14 : vector<8x16x4xbf16> to vector<128x4xbf16>
    %c2_19 = arith.constant 2 : index
    %c0_20 = arith.constant 0 : index
    %c0_21 = arith.constant 0 : index
    %16 = vector.load %arg3[%c2_19, %c0_20, %c0_21] : memref<9x4x16xbf16, #tpu.memory_space<vmem>>, vector<1x4x16xbf16>
    %17 = vector.shape_cast %16 : vector<1x4x16xbf16> to vector<4x16xbf16>
    %cst_22 = arith.constant dense<0.000000e+00> : vector<128x16xf32>
    %18 = tpu.matmul %15, %17, %cst_22 {dimension_numbers = #tpu.dot_dimension_numbers<[1], [0], [0], [1], [0, 0, 1, 1], [], []>} : vector<128x4xbf16>, vector<4x16xbf16>, vector<128x16xf32> -> vector<128x16xf32>
    %19 = arith.addf %12, %18 : vector<128x16xf32>
    %c0_23 = arith.constant 0 : index
    %c0_24 = arith.constant 0 : index
    %c1_25 = arith.constant 1 : index
    %c0_26 = arith.constant 0 : index
    %c0_27 = arith.constant 0 : index
    %20 = vector.load %arg2[%c0_23, %c0_24, %c1_25, %c0_26, %c0_27] : memref<1x1x10x18x4xbf16, #tpu.memory_space<vmem>>, vector<1x1x8x16x4xbf16>
    %21 = vector.shape_cast %20 : vector<1x1x8x16x4xbf16> to vector<8x16x4xbf16>
    %22 = vector.shape_cast %21 : vector<8x16x4xbf16> to vector<128x4xbf16>
    %c3 = arith.constant 3 : index
    %c0_28 = arith.constant 0 : index
    %c0_29 = arith.constant 0 : index
    %23 = vector.load %arg3[%c3, %c0_28, %c0_29] : memref<9x4x16xbf16, #tpu.memory_space<vmem>>, vector<1x4x16xbf16>
    %24 = vector.shape_cast %23 : vector<1x4x16xbf16> to vector<4x16xbf16>
    %cst_30 = arith.constant dense<0.000000e+00> : vector<128x16xf32>
    %25 = tpu.matmul %22, %24, %cst_30 {dimension_numbers = #tpu.dot_dimension_numbers<[1], [0], [0], [1], [0, 0, 1, 1], [], []>} : vector<128x4xbf16>, vector<4x16xbf16>, vector<128x16xf32> -> vector<128x16xf32>
    %26 = arith.addf %19, %25 : vector<128x16xf32>
    %c0_31 = arith.constant 0 : index
    %c0_32 = arith.constant 0 : index
    %c1_33 = arith.constant 1 : index
    %c1_34 = arith.constant 1 : index
    %c0_35 = arith.constant 0 : index
    %27 = vector.load %arg2[%c0_31, %c0_32, %c1_33, %c1_34, %c0_35] : memref<1x1x10x18x4xbf16, #tpu.memory_space<vmem>>, vector<1x1x8x16x4xbf16>
    %28 = vector.shape_cast %27 : vector<1x1x8x16x4xbf16> to vector<8x16x4xbf16>
    %29 = vector.shape_cast %28 : vector<8x16x4xbf16> to vector<128x4xbf16>
    %c4 = arith.constant 4 : index
    %c0_36 = arith.constant 0 : index
    %c0_37 = arith.constant 0 : index
    %30 = vector.load %arg3[%c4, %c0_36, %c0_37] : memref<9x4x16xbf16, #tpu.memory_space<vmem>>, vector<1x4x16xbf16>
    %31 = vector.shape_cast %30 : vector<1x4x16xbf16> to vector<4x16xbf16>
    %cst_38 = arith.constant dense<0.000000e+00> : vector<128x16xf32>
    %32 = tpu.matmul %29, %31, %cst_38 {dimension_numbers = #tpu.dot_dimension_numbers<[1], [0], [0], [1], [0, 0, 1, 1], [], []>} : vector<128x4xbf16>, vector<4x16xbf16>, vector<128x16xf32> -> vector<128x16xf32>
    %33 = arith.addf %26, %32 : vector<128x16xf32>
    %c0_39 = arith.constant 0 : index
    %c0_40 = arith.constant 0 : index
    %c1_41 = arith.constant 1 : index
    %c2_42 = arith.constant 2 : index
    %c0_43 = arith.constant 0 : index
    %34 = vector.load %arg2[%c0_39, %c0_40, %c1_41, %c2_42, %c0_43] : memref<1x1x10x18x4xbf16, #tpu.memory_space<vmem>>, vector<1x1x8x16x4xbf16>
    %35 = vector.shape_cast %34 : vector<1x1x8x16x4xbf16> to vector<8x16x4xbf16>
    %36 = vector.shape_cast %35 : vector<8x16x4xbf16> to vector<128x4xbf16>
    %c5 = arith.constant 5 : index
    %c0_44 = arith.constant 0 : index
    %c0_45 = arith.constant 0 : index
    %37 = vector.load %arg3[%c5, %c0_44, %c0_45] : memref<9x4x16xbf16, #tpu.memory_space<vmem>>, vector<1x4x16xbf16>
    %38 = vector.shape_cast %37 : vector<1x4x16xbf16> to vector<4x16xbf16>
    %cst_46 = arith.constant dense<0.000000e+00> : vector<128x16xf32>
    %39 = tpu.matmul %36, %38, %cst_46 {dimension_numbers = #tpu.dot_dimension_numbers<[1], [0], [0], [1], [0, 0, 1, 1], [], []>} : vector<128x4xbf16>, vector<4x16xbf16>, vector<128x16xf32> -> vector<128x16xf32>
    %40 = arith.addf %33, %39 : vector<128x16xf32>
    %c0_47 = arith.constant 0 : index
    %c0_48 = arith.constant 0 : index
    %c2_49 = arith.constant 2 : index
    %c0_50 = arith.constant 0 : index
    %c0_51 = arith.constant 0 : index
    %41 = vector.load %arg2[%c0_47, %c0_48, %c2_49, %c0_50, %c0_51] : memref<1x1x10x18x4xbf16, #tpu.memory_space<vmem>>, vector<1x1x8x16x4xbf16>
    %42 = vector.shape_cast %41 : vector<1x1x8x16x4xbf16> to vector<8x16x4xbf16>
    %43 = vector.shape_cast %42 : vector<8x16x4xbf16> to vector<128x4xbf16>
    %c6 = arith.constant 6 : index
    %c0_52 = arith.constant 0 : index
    %c0_53 = arith.constant 0 : index
    %44 = vector.load %arg3[%c6, %c0_52, %c0_53] : memref<9x4x16xbf16, #tpu.memory_space<vmem>>, vector<1x4x16xbf16>
    %45 = vector.shape_cast %44 : vector<1x4x16xbf16> to vector<4x16xbf16>
    %cst_54 = arith.constant dense<0.000000e+00> : vector<128x16xf32>
    %46 = tpu.matmul %43, %45, %cst_54 {dimension_numbers = #tpu.dot_dimension_numbers<[1], [0], [0], [1], [0, 0, 1, 1], [], []>} : vector<128x4xbf16>, vector<4x16xbf16>, vector<128x16xf32> -> vector<128x16xf32>
    %47 = arith.addf %40, %46 : vector<128x16xf32>
    %c0_55 = arith.constant 0 : index
    %c0_56 = arith.constant 0 : index
    %c2_57 = arith.constant 2 : index
    %c1_58 = arith.constant 1 : index
    %c0_59 = arith.constant 0 : index
    %48 = vector.load %arg2[%c0_55, %c0_56, %c2_57, %c1_58, %c0_59] : memref<1x1x10x18x4xbf16, #tpu.memory_space<vmem>>, vector<1x1x8x16x4xbf16>
    %49 = vector.shape_cast %48 : vector<1x1x8x16x4xbf16> to vector<8x16x4xbf16>
    %50 = vector.shape_cast %49 : vector<8x16x4xbf16> to vector<128x4xbf16>
    %c7 = arith.constant 7 : index
    %c0_60 = arith.constant 0 : index
    %c0_61 = arith.constant 0 : index
    %51 = vector.load %arg3[%c7, %c0_60, %c0_61] : memref<9x4x16xbf16, #tpu.memory_space<vmem>>, vector<1x4x16xbf16>
    %52 = vector.shape_cast %51 : vector<1x4x16xbf16> to vector<4x16xbf16>
    %cst_62 = arith.constant dense<0.000000e+00> : vector<128x16xf32>
    %53 = tpu.matmul %50, %52, %cst_62 {dimension_numbers = #tpu.dot_dimension_numbers<[1], [0], [0], [1], [0, 0, 1, 1], [], []>} : vector<128x4xbf16>, vector<4x16xbf16>, vector<128x16xf32> -> vector<128x16xf32>
    %54 = arith.addf %47, %53 : vector<128x16xf32>
    %c0_63 = arith.constant 0 : index
    %c0_64 = arith.constant 0 : index
    %c2_65 = arith.constant 2 : index
    %c2_66 = arith.constant 2 : index
    %c0_67 = arith.constant 0 : index
    %55 = vector.load %arg2[%c0_63, %c0_64, %c2_65, %c2_66, %c0_67] : memref<1x1x10x18x4xbf16, #tpu.memory_space<vmem>>, vector<1x1x8x16x4xbf16>
    %56 = vector.shape_cast %55 : vector<1x1x8x16x4xbf16> to vector<8x16x4xbf16>
    %57 = vector.shape_cast %56 : vector<8x16x4xbf16> to vector<128x4xbf16>
    %c8 = arith.constant 8 : index
    %c0_68 = arith.constant 0 : index
    %c0_69 = arith.constant 0 : index
    %58 = vector.load %arg3[%c8, %c0_68, %c0_69] : memref<9x4x16xbf16, #tpu.memory_space<vmem>>, vector<1x4x16xbf16>
    %59 = vector.shape_cast %58 : vector<1x4x16xbf16> to vector<4x16xbf16>
    %cst_70 = arith.constant dense<0.000000e+00> : vector<128x16xf32>
    %60 = tpu.matmul %57, %59, %cst_70 {dimension_numbers = #tpu.dot_dimension_numbers<[1], [0], [0], [1], [0, 0, 1, 1], [], []>} : vector<128x4xbf16>, vector<4x16xbf16>, vector<128x16xf32> -> vector<128x16xf32>
    %61 = arith.addf %54, %60 : vector<128x16xf32>
    %c0_71 = arith.constant 0 : index
    %c0_72 = arith.constant 0 : index
    %62 = vector.load %arg4[%c0_71, %c0_72] : memref<1x16xf32, #tpu.memory_space<vmem>>, vector<1x16xf32>
    %63 = vector.broadcast %62 : vector<1x16xf32> to vector<128x16xf32>
    %64 = arith.addf %61, %63 : vector<128x16xf32>
    %c0_73 = arith.constant 0 : index
    %c0_74 = arith.constant 0 : index
    %c0_75 = arith.constant 0 : index
    %65 = vector.load %arg5[%c0_73, %c0_74, %c0_75] : memref<1x128x16xf32, #tpu.memory_space<vmem>>, vector<1x128x16xf32>
    %66 = vector.shape_cast %65 : vector<1x128x16xf32> to vector<128x16xf32>
    %67 = vector.shape_cast %64 : vector<128x16xf32> to vector<1x128x16xf32>
    tpu.vector_store %arg5[%c0_73, %c0_74, %c0_75], %67 {strides = array<i32>} : memref<1x128x16xf32, #tpu.memory_space<vmem>>, vector<1x128x16xf32>,
    return
  }
  func.func @transform_0(%arg0: i32, %arg1: i32) -> (i32, i32, i32, i32, i32) {
    %c0_i32 = arith.constant 0 : i32
    %c0_i32_0 = arith.constant 0 : i32
    %c0_i32_1 = arith.constant 0 : i32
    %c0_i32_2 = arith.constant 0 : i32
    return %arg0, %arg1, %c0_i32, %c0_i32_0, %c0_i32_1 : i32, i32, i32, i32, i32
  }
  func.func @transform_1(%arg0: i32, %arg1: i32) -> (i32, i32, i32) {
    %c0_i32 = arith.constant 0 : i32
    %c0_i32_0 = arith.constant 0 : i32
    %c0_i32_1 = arith.constant 0 : i32
    %c0_i32_2 = arith.constant 0 : i32
    return %c0_i32, %c0_i32_0, %c0_i32_1 : i32, i32, i32
  }
  func.func @transform_2(%arg0: i32, %arg1: i32) -> (i32, i32) {
    %c0_i32 = arith.constant 0 : i32
    %c0_i32_0 = arith.constant 0 : i32
    %c0_i32_1 = arith.constant 0 : i32
    return %c0_i32, %c0_i32_0 : i32, i32
  }
  func.func @transform_3(%arg0: i32, %arg1: i32) -> (i32, i32, i32) {
    %c0_i32 = arith.constant 0 : i32
    %c0_i32_0 = arith.constant 0 : i32
    return %arg0, %arg1, %c0_i32 : i32, i32, i32
  }
}

</mosaic_0001>

<llo_original>
// kernel: upsample_forward.1
$region0: #{upsample_forward.1}
  #allocation0 [shape = 'u32[]', space=smem, size = 0x4, offset = 0x4, fixed_abs, tag = 'smem constant byte address 0x4 - core index']
  #allocation1 [shape = 'u32[144,128]{1,0:T(1,128)}', space=vmem, size = 0x12000, scoped, tag = 'internal scratch']
  %s0 = inlined_call_operand.hbm [shape: bf16[2,2,10,18,4], index: 0, kind: input, shape index: {}]
  %s1 = inlined_call_operand.hbm [shape: bf16[9,4,16], index: 1, kind: input, shape index: {}]
  %s2 = inlined_call_operand.hbm [shape: f32[1,16], index: 2, kind: input, shape index: {}]
  %s3 = inlined_call_operand.hbm [shape: f32[2,256,16], index: 3, kind: output, shape index: {}]
  %s4 = sld [smem:[#allocation0]]
  $region57: #{upsample_forward.1} parent=0
    _
  %s6 = ssub.s32 1, %s4
  %s7 = scalar_select 0, %s6, %s4
  $region1: #{upsample_forward.1} parent=0
    #allocation2 [shape = 'u8[122880]{0}', space=vmem, size = 0x1e000, scoped, tag = 'input window, operand 0']
    #allocation3 [shape = 's32[2]{0}', space=sflag, size = 0x8, scoped, tag = 'scoped memory for upsample_forward.1']
    #allocation4 [shape = 's32[2]{0}', space=sflag, size = 0x8, scoped, tag = 'scoped memory for upsample_forward.1']
    #allocation5 [shape = 'u8[9216]{0}', space=vmem, size = 0x2400, scoped, tag = 'input window, operand 1, single buffered']
    #allocation6 [shape = 's32[1]{0}', space=sflag, size = 0x4, scoped, tag = 'scoped memory for upsample_forward.1']
    #allocation7 [shape = 'u8[512]{0}', space=vmem, size = 0x400, scoped, tag = 'input window, operand 2, single buffered']
    #allocation8 [shape = 'u8[131072]{0}', space=vmem, size = 0x20000, scoped, tag = 'output window, operand 0']
    %8 = vsyncpa [#allocation3], 0
    %s9 = scalar_lea.sflag [#allocation3], 1
    %10 = vsyncpa %s9, 0
    %11 = vsyncpa [#allocation6], 0
    %12 = vsyncpa [#allocation4], 0
    %s13 = scalar_lea.sflag [#allocation4], 1
    %14 = vsyncpa %s13, 0
    loop: start=0, step=1, limit=6
    $region2: #{upsample_forward.1} parent=1 // loop_pre_header
      _
    $region3: #{upsample_forward.1} parent=1 // loop_header
      %s16 = sphi 0, %s20
      %p17 = scmp.ge.s32.totalorder %s16, 6
      %s23 = sphi 0, %s35
      %s24 = sphi 0, %s31
      %s25 = sphi 0, %s23
      %s26 = sphi 0, %s24
      %s27 = sphi 0, %s25
      %s28 = sphi 0, %s26
      %s40 = sphi 0, %s42
      %s43 = sphi 0, %s40
      %s44 = sphi 0, %s43
      %s60 = sphi 0, %s44
      %s64 = sphi 0, %s64
      %s66 = sphi 0, %s64
      %s67 = sphi 0, %s66
      %s81 = sphi 0, %s67
      %s85 = sphi 0, %s85
      %s87 = sphi 0, %s85
      %s88 = sphi 0, %s87
      %s102 = sphi 0, %s88
      %s110 = sphi 0, %s112
      %s113 = sphi 0, %s110
      %s114 = sphi 0, %s113
      %s130 = sphi 0, %s114
    $region4: #{upsample_forward.1} parent=1 // loop_header_branch
      %19 = sbr.rel (%p17) target = $region8
    $region5: #{upsample_forward.1} parent=1 // loop_body
      %s21 = ssub.s32 %s16, 1
      %s22 = ssub.s32 %s16, 2
      %s29 = sadd.s32 1, %s24
      %p30 = scmp.ge.s32.totalorder %s29, 2
      %s31 = scalar_select %p30, 0, %s29
      %s32 = sadd.s32 1, %s23
      %s33 = scalar_select %p30, %s32, %s23
      %p34 = scmp.ge.s32.totalorder %s33, 2
      %s35 = scalar_select %p34, 0, %s33
      %s36 = ssub.s32 %s23, %s35
      %s37 = ssub.s32 %s24, %s31
      %s38 = sor.u32 %s36, %s37
      %p39 = scmp.eq.s32.totalorder %s38, 0
      %s41 = sadd.s32 %s40, 1
      %s42 = scalar_select %p39, %s40, %s41
      %p45 = pneg %p39
      %p46 = scmp.eq.s32.totalorder %s16, 3
      %p47 = por %p45, %p46
      %p48 = scmp.ne.s32.totalorder %s40, %s43
      %p49 = scmp.eq.s32.totalorder %s16, 0
      %p50 = por %p48, %p49
      %p51 = scmp.ne.s32.totalorder %s40, %s43
      %p52 = scmp.eq.s32.totalorder %s21, 3
      %p53 = por %p51, %p52
      %p54 = scmp.ne.s32.totalorder %s43, %s44
      %p55 = scmp.eq.s32.totalorder %s21, 0
      %p56 = por %p54, %p55
      %p57 = scmp.ne.s32.totalorder %s43, %s44
      %p58 = scmp.eq.s32.totalorder %s22, 3
      %p59 = por %p57, %p58
      %p61 = scmp.ne.s32.totalorder %s44, %s60
      %p62 = scmp.eq.s32.totalorder %s22, 0
      %p63 = por %p61, %p62
      %s65 = sadd.s32 %s64, 1
      %p68 = scmp.eq.s32.totalorder %s16, 3
      %p69 = scmp.ne.s32.totalorder %s64, %s66
      %p70 = scmp.eq.s32.totalorder %s16, 0
      %p71 = por %p69, %p70
      %p72 = scmp.ne.s32.totalorder %s64, %s66
      %p73 = scmp.eq.s32.totalorder %s21, 3
      %p74 = por %p72, %p73
      %p75 = scmp.ne.s32.totalorder %s66, %s67
      %p76 = scmp.eq.s32.totalorder %s21, 0
      %p77 = por %p75, %p76
      %p78 = scmp.ne.s32.totalorder %s66, %s67
      %p79 = scmp.eq.s32.totalorder %s22, 3
      %p80 = por %p78, %p79
      %p82 = scmp.ne.s32.totalorder %s67, %s81
      %p83 = scmp.eq.s32.totalorder %s22, 0
      %p84 = por %p82, %p83
      %s86 = sadd.s32 %s85, 1
      %p89 = scmp.eq.s32.totalorder %s16, 3
      %p90 = scmp.ne.s32.totalorder %s85, %s87
      %p91 = scmp.eq.s32.totalorder %s16, 0
      %p92 = por %p90, %p91
      %p93 = scmp.ne.s32.totalorder %s85, %s87
      %p94 = scmp.eq.s32.totalorder %s21, 3
      %p95 = por %p93, %p94
      %p96 = scmp.ne.s32.totalorder %s87, %s88
      %p97 = scmp.eq.s32.totalorder %s21, 0
      %p98 = por %p96, %p97
      %p99 = scmp.ne.s32.totalorder %s87, %s88
      %p100 = scmp.eq.s32.totalorder %s22, 3
      %p101 = por %p99, %p100
      %p103 = scmp.ne.s32.totalorder %s88, %s102
      %p104 = scmp.eq.s32.totalorder %s22, 0
      %p105 = por %p103, %p104
      %s106 = ssub.s32 %s23, %s35
      %s107 = ssub.s32 %s24, %s31
      %s108 = sor.u32 %s106, %s107
      %p109 = scmp.eq.s32.totalorder %s108, 0
      %s111 = sadd.s32 %s110, 1
      %s112 = scalar_select %p109, %s110, %s111
      %p115 = pneg %p109
      %p116 = scmp.eq.s32.totalorder %s16, 3
      %p117 = por %p115, %p116
      %p118 = scmp.ne.s32.totalorder %s110, %s113
      %p119 = scmp.eq.s32.totalorder %s16, 0
      %p120 = por %p118, %p119
      %p121 = scmp.ne.s32.totalorder %s110, %s113
      %p122 = scmp.eq.s32.totalorder %s21, 3
      %p123 = por %p121, %p122
      %p124 = scmp.ne.s32.totalorder %s113, %s114
      %p125 = scmp.eq.s32.totalorder %s21, 0
      %p126 = por %p124, %p125
      %p127 = scmp.ne.s32.totalorder %s113, %s114
      %p128 = scmp.eq.s32.totalorder %s22, 3
      %p129 = por %p127, %p128
      %p131 = scmp.ne.s32.totalorder %s114, %s130
      %p132 = scmp.eq.s32.totalorder %s22, 0
      %p133 = por %p131, %p132
      %p134 = scmp.le.s32.totalorder 1, %s16
      %p135 = scmp.lt.s32.totalorder %s16, 5
      %p136 = pnand %p134, %p135
      %p137 = pneg %p136
      // Predicated region
      $region9: #{upsample_forward.1} parent=5 // pred_check
        _
      $region10: #{upsample_forward.1} parent=5 // pred_check_branch
        %139 = sbr.rel (%p136) target = $region12
      $region11: #{upsample_forward.1} parent=5 // pred_region
        %s140 = ssub.s32 %s16, 1
        // Predicated region
        $region13: #{upsample_forward.1} parent=11 // pred_check
          %p141 = pneg %p77
        $region14: #{upsample_forward.1} parent=11 // pred_check_branch
          %143 = sbr.rel (%p141) target = $region16
        $region15: #{upsample_forward.1} parent=11 // pred_region
          %s145 = ssub.s32 288, 288
          %146 = vsyncadd [#allocation6], %s145
          %s147 = sshll.u32 [#allocation5], 4
          %s148 = int_to_ptr.vmem [resolvable:$true] %s147
          %153 = dma.hbm_to_vmem [thread:$0]  %s1, 288, %s148, [#allocation6], 32, 32, 2
        $region16: #{upsample_forward.1} parent=11 // pred_fallthru
          _
        // Predicated region
        $region17: #{upsample_forward.1} parent=11 // pred_check
          %p154 = pneg %p98
        $region18: #{upsample_forward.1} parent=11 // pred_check_branch
          %156 = sbr.rel (%p154) target = $region20
        $region19: #{upsample_forward.1} parent=11 // pred_region
          %s158 = ssub.s32 16, 16
          %159 = vsyncadd [#allocation6], %s158
          %s161 = sshll.u32 [#allocation7], 4
          %s162 = int_to_ptr.vmem [resolvable:$true] %s161
          %164 = dma.hbm_to_vmem [thread:$0]  %s2, 16, %s162, [#allocation6]
        $region20: #{upsample_forward.1} parent=11 // pred_fallthru
          _
      $region12: #{upsample_forward.1} parent=5 // pred_fallthru
        _
      %p165 = scmp.lt.s32.totalorder %s16, 4
      // Predicated region
      $region21: #{upsample_forward.1} parent=5 // pred_check
        %p166 = pneg %p165
      $region22: #{upsample_forward.1} parent=5 // pred_check_branch
        %168 = sbr.rel (%p166) target = $region24
      $region23: #{upsample_forward.1} parent=5 // pred_region
        // Predicated region
        $region25: #{upsample_forward.1} parent=23 // pred_check
          %p169 = pneg %p50
        $region26: #{upsample_forward.1} parent=23 // pred_check_branch
          %171 = sbr.rel (%p169) target = $region28
        $region27: #{upsample_forward.1} parent=23 // pred_region
          %s172 = sand.u32 %s40, 1
          %s173 = scalar_lea.sflag [#allocation3], %s172
          %s174 = sand.u32 %s40, 1
          %s175 = smul.addr %s174, 120
          %s176 = scalar_lea.vmem [#allocation2], %s175
          %s178 = ssub.s32 1920, 1920
          %179 = vsyncadd %s173, %s178
          %s180 = smul.addr %s24, 30
          %s181 = smul.addr %s23, 60
          %s182 = sadd.s32 %s180, %s181
          %s183 = smul.addr %s182, 64
          %s184 = scalar_lea.hbm %s0, %s183
          %s185 = sshll.u32 %s176, 4
          %s186 = int_to_ptr.vmem [resolvable:$true] %s185
          %191 = dma.hbm_to_vmem [thread:$0]  %s184, 1920, %s186, %s173, 64, 64, 4
        $region28: #{upsample_forward.1} parent=23 // pred_fallthru
          _
      $region24: #{upsample_forward.1} parent=5 // pred_fallthru
        _
      %p192 = scmp.le.s32.totalorder 1, %s16
      %p193 = scmp.lt.s32.totalorder %s16, 5
      %p194 = pnand %p192, %p193
      %p195 = pneg %p194
      // Predicated region
      $region29: #{upsample_forward.1} parent=5 // pred_check
        _
      $region30: #{upsample_forward.1} parent=5 // pred_check_branch
        %197 = sbr.rel (%p194) target = $region32
      $region31: #{upsample_forward.1} parent=5 // pred_region
        %s198 = ssub.s32 %s16, 1
        %s199 = sand.u32 %s43, 1
        %s200 = scalar_lea.sflag [#allocation3], %s199
        %s201 = sand.u32 %s43, 1
        %s202 = smul.addr %s201, 120
        %s203 = scalar_lea.vmem [#allocation2], %s202
        // Predicated region
        $region33: #{upsample_forward.1} parent=31 // pred_check
          %p204 = pneg %p56
        $region34: #{upsample_forward.1} parent=31 // pred_check_branch
          %206 = sbr.rel (%p204) target = $region36
        $region35: #{upsample_forward.1} parent=31 // pred_region
          %207 = dma.done %s200, 1920
        $region36: #{upsample_forward.1} parent=31 // pred_fallthru
          _
        // Predicated region
        $region37: #{upsample_forward.1} parent=31 // pred_check
          %p208 = pneg %p77
        $region38: #{upsample_forward.1} parent=31 // pred_check_branch
          %210 = sbr.rel (%p208) target = $region40
        $region39: #{upsample_forward.1} parent=31 // pred_region
          %211 = dma.done [#allocation6], 288
        $region40: #{upsample_forward.1} parent=31 // pred_fallthru
          _
        // Predicated region
        $region41: #{upsample_forward.1} parent=31 // pred_check
          %p212 = pneg %p98
        $region42: #{upsample_forward.1} parent=31 // pred_check_branch
          %214 = sbr.rel (%p212) target = $region44
        $region43: #{upsample_forward.1} parent=31 // pred_region
          %215 = dma.done [#allocation6], 16
        $region44: #{upsample_forward.1} parent=31 // pred_fallthru
          _
        %s216 = sand.u32 %s43, 1
        %s217 = scalar_lea.sflag [#allocation3], %s216
        %s218 = sand.u32 %s43, 1
        %s219 = smul.addr %s218, 120
        %s220 = scalar_lea.vmem [#allocation2], %s219
        %p221 = pneg %p56
        %p222 = pneg %p53
        %p223 = pneg %p77
        %p224 = pneg %p74
        %p225 = pneg %p98
        %p226 = pneg %p95
        %p227 = pneg %p126
        %p228 = pneg %p123
        %s229 = sand.u32 %s113, 1
        %s230 = scalar_lea.sflag [#allocation4], %s229
        %s231 = sand.u32 %s113, 1
        %s232 = smul.addr %s231, 128
        %s233 = scalar_lea.vmem [#allocation8], %s232
        %s234 = smul.u32 16, %s26
        %v236 = vld [vmem:[%s203] sm:$0xf]
        %v237 = vld [vmem:[%s203 + $0x4] sm:$0xf]
        %v238 = vld [vmem:[%s203 + $0xc] sm:$0xf]
        %v239 = vld [vmem:[%s203 + $0x10] sm:$0xf]
        %v240 = vld [vmem:[%s203 + $0x18] sm:$0xf]
        %v241 = vld [vmem:[%s203 + $0x1c] sm:$0xf]
        %v242 = vld [vmem:[%s203 + $0x24] sm:$0xf]
        %v243 = vld [vmem:[%s203 + $0x28] sm:$0xf]
        %v244 = vld [vmem:[%s203 + $0x30] sm:$0xf]
        %v245 = vld [vmem:[%s203 + $0x34] sm:$0xf]
        %v246 = vld [vmem:[%s203 + $0x3c] sm:$0xf]
        %v247 = vld [vmem:[%s203 + $0x40] sm:$0xf]
        %v248 = vld [vmem:[%s203 + $0x48] sm:$0xf]
        %v249 = vld [vmem:[%s203 + $0x4c] sm:$0xf]
        %v250 = vld [vmem:[%s203 + $0x54] sm:$0xf]
        %v251 = vld [vmem:[%s203 + $0x58] sm:$0xf]
        %v252 = vld [vmem:[#allocation5] sm:$0x3]
        %v253 = vld [vmem:[%s203 + $0x8] sm:$0x1]
        %v254 = vld [vmem:[%s203 + $0x14] sm:$0x1]
        %v255 = vld [vmem:[%s203 + $0x20] sm:$0x1]
        %v256 = vld [vmem:[%s203 + $0x2c] sm:$0x1]
        %v257 = vld [vmem:[%s203 + $0x38] sm:$0x1]
        %v258 = vld [vmem:[%s203 + $0x44] sm:$0x1]
        %v259 = vld [vmem:[%s203 + $0x50] sm:$0x1]
        %v260 = vld [vmem:[%s203 + $0x5c] sm:$0x1]
        %vm261 = vsmask.f32 3328
        %vm262 = vsmask.f32 7440
        %vm263 = vmor %vm261, %vm262
        %v265 = vshrl.u32 %v236, 16
        %v267 = vrot.slane %v265, 4
        %v268 = vshll.u32 %v236, 16
        %v270 = vrot.slane %v268, 5
        %v271 = vor.u32 %v267, %v270
        %v272 = vrot.slane %v271, 4
        %v274 = vshll.u32 %v237, 16
        %v276 = vrot.slane %v274, 5
        %v277 = vsel %vm263, %v272, %v276
        %v278 = vshrl.u32 %v237, 16
        %v280 = vrot.slane %v278, 4
        %v281 = vor.u32 %v280, %v276
        %v282 = vrot.slane %v281, 4
        %v284 = vshll.u32 %v253, 16
        %v286 = vrot.slane %v284, 5
        %v287 = vsel %vm263, %v282, %v286
        %v289 = vshrl.u32 %v238, 16
        %v291 = vrot.slane %v289, 4
        %v292 = vshll.u32 %v238, 16
        %v294 = vrot.slane %v292, 5
        %v295 = vor.u32 %v291, %v294
        %v296 = vrot.slane %v295, 4
        %v298 = vshll.u32 %v239, 16
        %v300 = vrot.slane %v298, 5
        %v301 = vsel %vm263, %v296, %v300
        %v302 = vshrl.u32 %v239, 16
        %v304 = vrot.slane %v302, 4
        %v305 = vor.u32 %v304, %v300
        %v306 = vrot.slane %v305, 4
        %v308 = vshll.u32 %v254, 16
        %v310 = vrot.slane %v308, 5
        %v311 = vsel %vm263, %v306, %v310
        %v313 = vshrl.u32 %v240, 16
        %v315 = vrot.slane %v313, 4
        %v316 = vshll.u32 %v240, 16
        %v318 = vrot.slane %v316, 5
        %v319 = vor.u32 %v315, %v318
        %v320 = vrot.slane %v319, 4
        %v322 = vshll.u32 %v241, 16
        %v324 = vrot.slane %v322, 5
        %v325 = vsel %vm263, %v320, %v324
        %v326 = vshrl.u32 %v241, 16
        %v328 = vrot.slane %v326, 4
        %v329 = vor.u32 %v328, %v324
        %v330 = vrot.slane %v329, 4
        %v332 = vshll.u32 %v255, 16
        %v334 = vrot.slane %v332, 5
        %v335 = vsel %vm263, %v330, %v334
        %v337 = vshrl.u32 %v242, 16
        %v339 = vrot.slane %v337, 4
        %v340 = vshll.u32 %v242, 16
        %v342 = vrot.slane %v340, 5
        %v343 = vor.u32 %v339, %v342
        %v344 = vrot.slane %v343, 4
        %v346 = vshll.u32 %v243, 16
        %v348 = vrot.slane %v346, 5
        %v349 = vsel %vm263, %v344, %v348
        %v350 = vshrl.u32 %v243, 16
        %v352 = vrot.slane %v350, 4
        %v353 = vor.u32 %v352, %v348
        %v354 = vrot.slane %v353, 4
        %v356 = vshll.u32 %v256, 16
        %v358 = vrot.slane %v356, 5
        %v359 = vsel %vm263, %v354, %v358
        %v361 = vshrl.u32 %v244, 16
        %v363 = vrot.slane %v361, 4
        %v364 = vshll.u32 %v244, 16
        %v366 = vrot.slane %v364, 5
        %v367 = vor.u32 %v363, %v366
        %v368 = vrot.slane %v367, 4
        %v370 = vshll.u32 %v245, 16
        %v372 = vrot.slane %v370, 5
        %v373 = vsel %vm263, %v368, %v372
        %v374 = vshrl.u32 %v245, 16
        %v376 = vrot.slane %v374, 4
        %v377 = vor.u32 %v376, %v372
        %v378 = vrot.slane %v377, 4
        %v380 = vshll.u32 %v257, 16
        %v382 = vrot.slane %v380, 5
        %v383 = vsel %vm263, %v378, %v382
        %v385 = vshrl.u32 %v246, 16
        %v387 = vrot.slane %v385, 4
        %v388 = vshll.u32 %v246, 16
        %v390 = vrot.slane %v388, 5
        %v391 = vor.u32 %v387, %v390
        %v392 = vrot.slane %v391, 4
        %v394 = vshll.u32 %v247, 16
        %v396 = vrot.slane %v394, 5
        %v397 = vsel %vm263, %v392, %v396
        %v398 = vshrl.u32 %v247, 16
        %v400 = vrot.slane %v398, 4
        %v401 = vor.u32 %v400, %v396
        %v402 = vrot.slane %v401, 4
        %v404 = vshll.u32 %v258, 16
        %v406 = vrot.slane %v404, 5
        %v407 = vsel %vm263, %v402, %v406
        %v409 = vshrl.u32 %v248, 16
        %v411 = vrot.slane %v409, 4
        %v412 = vshll.u32 %v248, 16
        %v414 = vrot.slane %v412, 5
        %v415 = vor.u32 %v411, %v414
        %v416 = vrot.slane %v415, 4
        %v418 = vshll.u32 %v249, 16
        %v420 = vrot.slane %v418, 5
        %v421 = vsel %vm263, %v416, %v420
        %v422 = vshrl.u32 %v249, 16
        %v424 = vrot.slane %v422, 4
        %v425 = vor.u32 %v424, %v420
        %v426 = vrot.slane %v425, 4
        %v428 = vshll.u32 %v259, 16
        %v430 = vrot.slane %v428, 5
        %v431 = vsel %vm263, %v426, %v430
        %v433 = vshrl.u32 %v250, 16
        %v435 = vrot.slane %v433, 4
        %v436 = vshll.u32 %v250, 16
        %v438 = vrot.slane %v436, 5
        %v439 = vor.u32 %v435, %v438
        %v440 = vrot.slane %v439, 4
        %v442 = vshll.u32 %v251, 16
        %v444 = vrot.slane %v442, 5
        %v445 = vsel %vm263, %v440, %v444
        %v446 = vshrl.u32 %v251, 16
        %v448 = vrot.slane %v446, 4
        %v449 = vor.u32 %v448, %v444
        %v450 = vrot.slane %v449, 4
        %v452 = vshll.u32 %v260, 16
        %v454 = vrot.slane %v452, 5
        %v455 = vsel %vm263, %v450, %v454
        %s456 = scalar_lea.vmem [#allocation5], 2
        %v457 = vld [vmem:[%s456] sm:$0x3]
        %v458 = vunpack.c.l.b16 %v277
        %v459 = vunpack.c.l.b16 %v287
        %v460 = vunpack.c.l.b16 %v301
        %v461 = vunpack.c.l.b16 %v311
        %v462 = vunpack.c.l.b16 %v325
        %v463 = vunpack.c.l.b16 %v335
        %v464 = vunpack.c.l.b16 %v349
        %v465 = vunpack.c.l.b16 %v359
        %v466 = vunpack.c.l.b16 %v373
        %v467 = vunpack.c.l.b16 %v383
        %v468 = vunpack.c.l.b16 %v397
        %v469 = vunpack.c.l.b16 %v407
        %v470 = vunpack.c.l.b16 %v421
        %v471 = vunpack.c.l.b16 %v431
        %v472 = vunpack.c.l.b16 %v445
        %v473 = vunpack.c.l.b16 %v455
        %v474 = vpack.c.b16 %v459, %v458
        %v475 = vpack.c.b16 %v461, %v460
        %v476 = vpack.c.b16 %v463, %v462
        %v477 = vpack.c.b16 %v465, %v464
        %v478 = vpack.c.b16 %v467, %v466
        %v479 = vpack.c.b16 %v469, %v468
        %v480 = vpack.c.b16 %v471, %v470
        %v481 = vpack.c.b16 %v473, %v472
        %vm482 = vcmask 31744
        %v484 = vsel %vm482, %v474, 0
        %v487 = vsel %vm482, %v475, 0
        %v490 = vsel %vm482, %v476, 0
        %v493 = vsel %vm482, %v477, 0
        %v496 = vsel %vm482, %v478, 0
        %v499 = vsel %vm482, %v479, 0
        %v502 = vsel %vm482, %v480, 0
        %v505 = vsel %vm482, %v481, 0
        %vm507 = vcmask 1041408
        %v509 = vsel %vm507, %v457, 0
        %511 = vmatprep.subr.bf16.mxu0 0
        %512 = vmatpush1.bf16.msra.mxu0 %v509
        %513 = vmatprep.subr.bf16.mxu0 0
        %514 = vmatpush1.bf16.msra.mxu0 0
        %515 = vmatprep.subr.bf16.mxu0 0
        %516 = vmatpush1.bf16.msra.mxu0 0
        %517 = vmatprep.subr.bf16.mxu0 0
        %518 = vmatpush1.bf16.msra.mxu0 0
        %519 = vmatprep.subr.bf16.mxu0 0
        %520 = vmatpush1.bf16.msra.mxu0 0
        %521 = vmatprep.subr.bf16.mxu0 0
        %522 = vmatpush1.bf16.msra.mxu0 0
        %523 = vmatprep.subr.bf16.mxu0 0
        %524 = vmatpush1.bf16.msra.mxu0 0
        %525 = vmatprep.subr.bf16.mxu0 0
        %526 = vmatpush1.bf16.msra.mxu0 0
        %527 = vmatprep.subr.bf16.mxu0 0
        %528 = vmatpush1.bf16.msra.mxu0 0
        %529 = vmatprep.subr.bf16.mxu0 0
        %530 = vmatpush1.bf16.msra.mxu0 0
        %531 = vmatprep.subr.bf16.mxu0 0
        %532 = vmatpush1.bf16.msra.mxu0 0
        %533 = vmatprep.subr.bf16.mxu0 0
        %534 = vmatpush1.bf16.msra.mxu0 0
        %535 = vmatprep.subr.bf16.mxu0 0
        %536 = vmatpush1.bf16.msra.mxu0 0
        %537 = vmatprep.subr.bf16.mxu0 0
        %538 = vmatpush1.bf16.msra.mxu0 0
        %539 = vmatprep.subr.bf16.mxu0 0
        %540 = vmatpush1.bf16.msra.mxu0 0
        %541 = vmatprep.subr.bf16.mxu0 0
        %542 = vmatpush1.bf16.msra.mxu0 0
        %543 = vmatprep.mubr.bf16.mxu0 0
        %544 = vmatmul.mubr.bf16.gmra.mrb[0].mxu0 %v484
        %v545 = vpop.f32.mrb[0].mxu0
        %v546 = vadd.f32 0.0, %v545
        %v547 = vpop.f32.mrb[0].mxu0
        %v548 = vpop.f32.mrb[0].mxu0
        %v549 = vadd.f32 0.0, %v548
        %v550 = vpop.f32.mrb[0].mxu0
        %551 = vmatprep.mubr.bf16.mxu0 0
        %552 = vmatmul.mubr.bf16.gmra.mrb[0].mxu0 %v487
        %v553 = vpop.f32.mrb[0].mxu0
        %v554 = vadd.f32 0.0, %v553
        %v555 = vpop.f32.mrb[0].mxu0
        %v556 = vpop.f32.mrb[0].mxu0
        %v557 = vadd.f32 0.0, %v556
        %v558 = vpop.f32.mrb[0].mxu0
        %559 = vmatprep.mubr.bf16.mxu0 0
        %560 = vmatmul.mubr.bf16.gmra.mrb[0].mxu0 %v490
        %v561 = vpop.f32.mrb[0].mxu0
        %v562 = vadd.f32 0.0, %v561
        %v563 = vpop.f32.mrb[0].mxu0
        %v564 = vpop.f32.mrb[0].mxu0
        %v565 = vadd.f32 0.0, %v564
        %v566 = vpop.f32.mrb[0].mxu0
        %567 = vmatprep.mubr.bf16.mxu0 0
        %568 = vmatmul.mubr.bf16.gmra.mrb[0].mxu0 %v493
        %v569 = vpop.f32.mrb[0].mxu0
        %v570 = vadd.f32 0.0, %v569
        %v571 = vpop.f32.mrb[0].mxu0
        %v572 = vpop.f32.mrb[0].mxu0
        %v573 = vadd.f32 0.0, %v572
        %v574 = vpop.f32.mrb[0].mxu0
        %575 = vmatprep.mubr.bf16.mxu0 0
        %576 = vmatmul.mubr.bf16.gmra.mrb[0].mxu0 %v496
        %v577 = vpop.f32.mrb[0].mxu0
        %v578 = vadd.f32 0.0, %v577
        %v579 = vpop.f32.mrb[0].mxu0
        %v580 = vpop.f32.mrb[0].mxu0
        %v581 = vadd.f32 0.0, %v580
        %v582 = vpop.f32.mrb[0].mxu0
        %583 = vmatprep.mubr.bf16.mxu0 0
        %584 = vmatmul.mubr.bf16.gmra.mrb[0].mxu0 %v499
        %v585 = vpop.f32.mrb[0].mxu0
        %v586 = vadd.f32 0.0, %v585
        %v587 = vpop.f32.mrb[0].mxu0
        %v588 = vpop.f32.mrb[0].mxu0
        %v589 = vadd.f32 0.0, %v588
        %v590 = vpop.f32.mrb[0].mxu0
        %591 = vmatprep.mubr.bf16.mxu0 0
        %592 = vmatmul.mubr.bf16.gmra.mrb[0].mxu0 %v502
        %v593 = vpop.f32.mrb[0].mxu0
        %v594 = vadd.f32 0.0, %v593
        %v595 = vpop.f32.mrb[0].mxu0
        %v596 = vpop.f32.mrb[0].mxu0
        %v597 = vadd.f32 0.0, %v596
        %v598 = vpop.f32.mrb[0].mxu0
        %599 = vmatprep.mubr.bf16.mxu0 0
        %600 = vmatmul.mubr.bf16.gmra.mrb[0].mxu0 %v505
        %v601 = vpop.f32.mrb[0].mxu0
        %v602 = vadd.f32 0.0, %v601
        %v603 = vpop.f32.mrb[0].mxu0
        %v604 = vpop.f32.mrb[0].mxu0
        %v605 = vadd.f32 0.0, %v604
        %v606 = vpop.f32.mrb[0].mxu0
        %607 = vdwg.mxu0
        %v624 = vunpack.c.l.b16 %v236
        %v625 = vunpack.c.l.b16 %v237
        %v626 = vunpack.c.l.b16 %v238
        %v627 = vunpack.c.l.b16 %v239
        %v628 = vunpack.c.l.b16 %v240
        %v629 = vunpack.c.l.b16 %v241
        %v630 = vunpack.c.l.b16 %v242
        %v631 = vunpack.c.l.b16 %v243
        %v632 = vunpack.c.l.b16 %v244
        %v633 = vunpack.c.l.b16 %v245
        %v634 = vunpack.c.l.b16 %v246
        %v635 = vunpack.c.l.b16 %v247
        %v636 = vunpack.c.l.b16 %v248
        %v637 = vunpack.c.l.b16 %v249
        %v638 = vunpack.c.l.b16 %v250
        %v639 = vunpack.c.l.b16 %v251
        %v640 = vpack.c.b16 %v625, %v624
        %v641 = vpack.c.b16 %v627, %v626
        %v642 = vpack.c.b16 %v629, %v628
        %v643 = vpack.c.b16 %v631, %v630
        %v644 = vpack.c.b16 %v633, %v632
        %v645 = vpack.c.b16 %v635, %v634
        %v646 = vpack.c.b16 %v637, %v636
        %v647 = vpack.c.b16 %v639, %v638
        %v649 = vsel %vm482, %v640, 0
        %v652 = vsel %vm482, %v641, 0
        %v655 = vsel %vm482, %v642, 0
        %v658 = vsel %vm482, %v643, 0
        %v661 = vsel %vm482, %v644, 0
        %v664 = vsel %vm482, %v645, 0
        %v667 = vsel %vm482, %v646, 0
        %v670 = vsel %vm482, %v647, 0
        %v673 = vsel %vm507, %v252, 0
        %675 = vmatprep.subr.bf16.mxu0 0
        %676 = vmatpush1.bf16.msra.mxu0 %v673
        %677 = vmatprep.subr.bf16.mxu0 0
        %678 = vmatpush1.bf16.msra.mxu0 0
        %679 = vmatprep.subr.bf16.mxu0 0
        %680 = vmatpush1.bf16.msra.mxu0 0
        %681 = vmatprep.subr.bf16.mxu0 0
        %682 = vmatpush1.bf16.msra.mxu0 0
        %683 = vmatprep.subr.bf16.mxu0 0
        %684 = vmatpush1.bf16.msra.mxu0 0
        %685 = vmatprep.subr.bf16.mxu0 0
        %686 = vmatpush1.bf16.msra.mxu0 0
        %687 = vmatprep.subr.bf16.mxu0 0
        %688 = vmatpush1.bf16.msra.mxu0 0
        %689 = vmatprep.subr.bf16.mxu0 0
        %690 = vmatpush1.bf16.msra.mxu0 0
        %691 = vmatprep.subr.bf16.mxu0 0
        %692 = vmatpush1.bf16.msra.mxu0 0
        %693 = vmatprep.subr.bf16.mxu0 0
        %694 = vmatpush1.bf16.msra.mxu0 0
        %695 = vmatprep.subr.bf16.mxu0 0
        %696 = vmatpush1.bf16.msra.mxu0 0
        %697 = vmatprep.subr.bf16.mxu0 0
        %698 = vmatpush1.bf16.msra.mxu0 0
        %699 = vmatprep.subr.bf16.mxu0 0
        %700 = vmatpush1.bf16.msra.mxu0 0
        %701 = vmatprep.subr.bf16.mxu0 0
        %702 = vmatpush1.bf16.msra.mxu0 0
        %703 = vmatprep.subr.bf16.mxu0 0
        %704 = vmatpush1.bf16.msra.mxu0 0
        %705 = vmatprep.subr.bf16.mxu0 0
        %706 = vmatpush1.bf16.msra.mxu0 0
        %707 = vmatprep.mubr.bf16.mxu0 0
        %708 = vmatmul.mubr.bf16.gmra.mrb[0].mxu0 %v649
        %v709 = vpop.f32.mrb[0].mxu0
        %v710 = vadd.f32 %v546, %v709
        %v711 = vpop.f32.mrb[0].mxu0
        %v712 = vpop.f32.mrb[0].mxu0
        %v713 = vadd.f32 %v549, %v712
        %v714 = vpop.f32.mrb[0].mxu0
        %715 = vmatprep.mubr.bf16.mxu0 0
        %716 = vmatmul.mubr.bf16.gmra.mrb[0].mxu0 %v652
        %v717 = vpop.f32.mrb[0].mxu0
        %v718 = vadd.f32 %v554, %v717
        %v719 = vpop.f32.mrb[0].mxu0
        %v720 = vpop.f32.mrb[0].mxu0
        %v721 = vadd.f32 %v557, %v720
        %v722 = vpop.f32.mrb[0].mxu0
        %723 = vmatprep.mubr.bf16.mxu0 0
        %724 = vmatmul.mubr.bf16.gmra.mrb[0].mxu0 %v655
        %v725 = vpop.f32.mrb[0].mxu0
        %v726 = vadd.f32 %v562, %v725
        %v727 = vpop.f32.mrb[0].mxu0
        %v728 = vpop.f32.mrb[0].mxu0
        %v729 = vadd.f32 %v565, %v728
        %v730 = vpop.f32.mrb[0].mxu0
        %731 = vmatprep.mubr.bf16.mxu0 0
        %732 = vmatmul.mubr.bf16.gmra.mrb[0].mxu0 %v658
        %v733 = vpop.f32.mrb[0].mxu0
        %v734 = vadd.f32 %v570, %v733
        %v735 = vpop.f32.mrb[0].mxu0
        %v736 = vpop.f32.mrb[0].mxu0
        %v737 = vadd.f32 %v573, %v736
        %v738 = vpop.f32.mrb[0].mxu0
        %739 = vmatprep.mubr.bf16.mxu0 0
        %740 = vmatmul.mubr.bf16.gmra.mrb[0].mxu0 %v661
        %v741 = vpop.f32.mrb[0].mxu0
        %v742 = vadd.f32 %v578, %v741
        %v743 = vpop.f32.mrb[0].mxu0
        %v744 = vpop.f32.mrb[0].mxu0
        %v745 = vadd.f32 %v581, %v744
        %v746 = vpop.f32.mrb[0].mxu0
        %747 = vmatprep.mubr.bf16.mxu0 0
        %748 = vmatmul.mubr.bf16.gmra.mrb[0].mxu0 %v664
        %v749 = vpop.f32.mrb[0].mxu0
        %v750 = vadd.f32 %v586, %v749
        %v751 = vpop.f32.mrb[0].mxu0
        %v752 = vpop.f32.mrb[0].mxu0
        %v753 = vadd.f32 %v589, %v752
        %v754 = vpop.f32.mrb[0].mxu0
        %755 = vmatprep.mubr.bf16.mxu0 0
        %756 = vmatmul.mubr.bf16.gmra.mrb[0].mxu0 %v667
        %v757 = vpop.f32.mrb[0].mxu0
        %v758 = vadd.f32 %v594, %v757
        %v759 = vpop.f32.mrb[0].mxu0
        %v760 = vpop.f32.mrb[0].mxu0
        %v761 = vadd.f32 %v597, %v760
        %v762 = vpop.f32.mrb[0].mxu0
        %763 = vmatprep.mubr.bf16.mxu0 0
        %764 = vmatmul.mubr.bf16.gmra.mrb[0].mxu0 %v670
        %v765 = vpop.f32.mrb[0].mxu0
        %v766 = vadd.f32 %v602, %v765
        %v767 = vpop.f32.mrb[0].mxu0
        %v768 = vpop.f32.mrb[0].mxu0
        %v769 = vadd.f32 %v605, %v768
        %v770 = vpop.f32.mrb[0].mxu0
        %771 = vdwg.mxu0
        %v772 = vld [vmem:[%s203] sm:$0xe]
        %v773 = vld [vmem:[%s203 + $0xc] sm:$0xe]
        %v774 = vld [vmem:[%s203 + $0x18] sm:$0xe]
        %v775 = vld [vmem:[%s203 + $0x24] sm:$0xe]
        %v776 = vld [vmem:[%s203 + $0x30] sm:$0xe]
        %v777 = vld [vmem:[%s203 + $0x3c] sm:$0xe]
        %v778 = vld [vmem:[%s203 + $0x48] sm:$0xe]
        %v779 = vld [vmem:[%s203 + $0x54] sm:$0xe]
        %vm796 = vcmask 1042432
        %vm797 = vcmask 1046532
        %vm798 = vmor %vm796, %vm797
        %v799 = vrot.slane %v772, 5
        %v800 = vrot.slane %v799, 4
        %v801 = vrot.slane %v237, 5
        %v802 = vsel %vm798, %v800, %v801
        %v803 = vrot.slane %v801, 4
        %v804 = vrot.slane %v253, 5
        %v805 = vsel %vm798, %v803, %v804
        %v806 = vrot.slane %v773, 5
        %v807 = vrot.slane %v806, 4
        %v808 = vrot.slane %v239, 5
        %v809 = vsel %vm798, %v807, %v808
        %v810 = vrot.slane %v808, 4
        %v811 = vrot.slane %v254, 5
        %v812 = vsel %vm798, %v810, %v811
        %v813 = vrot.slane %v774, 5
        %v814 = vrot.slane %v813, 4
        %v815 = vrot.slane %v241, 5
        %v816 = vsel %vm798, %v814, %v815
        %v817 = vrot.slane %v815, 4
        %v818 = vrot.slane %v255, 5
        %v819 = vsel %vm798, %v817, %v818
        %v820 = vrot.slane %v775, 5
        %v821 = vrot.slane %v820, 4
        %v822 = vrot.slane %v243, 5
        %v823 = vsel %vm798, %v821, %v822
        %v824 = vrot.slane %v822, 4
        %v825 = vrot.slane %v256, 5
        %v826 = vsel %vm798, %v824, %v825
        %v827 = vrot.slane %v776, 5
        %v828 = vrot.slane %v827, 4
        %v829 = vrot.slane %v245, 5
        %v830 = vsel %vm798, %v828, %v829
        %v831 = vrot.slane %v829, 4
        %v832 = vrot.slane %v257, 5
        %v833 = vsel %vm798, %v831, %v832
        %v834 = vrot.slane %v777, 5
        %v835 = vrot.slane %v834, 4
        %v836 = vrot.slane %v247, 5
        %v837 = vsel %vm798, %v835, %v836
        %v838 = vrot.slane %v836, 4
        %v839 = vrot.slane %v258, 5
        %v840 = vsel %vm798, %v838, %v839
        %v841 = vrot.slane %v778, 5
        %v842 = vrot.slane %v841, 4
        %v843 = vrot.slane %v249, 5
        %v844 = vsel %vm798, %v842, %v843
        %v845 = vrot.slane %v843, 4
        %v846 = vrot.slane %v259, 5
        %v847 = vsel %vm798, %v845, %v846
        %v848 = vrot.slane %v779, 5
        %v849 = vrot.slane %v848, 4
        %v850 = vrot.slane %v251, 5
        %v851 = vsel %vm798, %v849, %v850
        %v852 = vrot.slane %v850, 4
        %v853 = vrot.slane %v260, 5
        %v854 = vsel %vm798, %v852, %v853
        %s855 = scalar_lea.vmem [#allocation5], 4
        %v856 = vld [vmem:[%s855] sm:$0x3]
        %v857 = vunpack.c.l.b16 %v802
        %v858 = vunpack.c.l.b16 %v805
        %v859 = vunpack.c.l.b16 %v809
        %v860 = vunpack.c.l.b16 %v812
        %v861 = vunpack.c.l.b16 %v816
        %v862 = vunpack.c.l.b16 %v819
        %v863 = vunpack.c.l.b16 %v823
        %v864 = vunpack.c.l.b16 %v826
        %v865 = vunpack.c.l.b16 %v830
        %v866 = vunpack.c.l.b16 %v833
        %v867 = vunpack.c.l.b16 %v837
        %v868 = vunpack.c.l.b16 %v840
        %v869 = vunpack.c.l.b16 %v844
        %v870 = vunpack.c.l.b16 %v847
        %v871 = vunpack.c.l.b16 %v851
        %v872 = vunpack.c.l.b16 %v854
        %v873 = vpack.c.b16 %v858, %v857
        %v874 = vpack.c.b16 %v860, %v859
        %v875 = vpack.c.b16 %v862, %v861
        %v876 = vpack.c.b16 %v864, %v863
        %v877 = vpack.c.b16 %v866, %v865
        %v878 = vpack.c.b16 %v868, %v867
        %v879 = vpack.c.b16 %v870, %v869
        %v880 = vpack.c.b16 %v872, %v871
        %v882 = vsel %vm482, %v873, 0
        %v885 = vsel %vm482, %v874, 0
        %v888 = vsel %vm482, %v875, 0
        %v891 = vsel %vm482, %v876, 0
        %v894 = vsel %vm482, %v877, 0
        %v897 = vsel %vm482, %v878, 0
        %v900 = vsel %vm482, %v879, 0
        %v903 = vsel %vm482, %v880, 0
        %v906 = vsel %vm507, %v856, 0
        %908 = vmatprep.subr.bf16.mxu0 0
        %909 = vmatpush1.bf16.msra.mxu0 %v906
        %910 = vmatprep.subr.bf16.mxu0 0
        %911 = vmatpush1.bf16.msra.mxu0 0
        %912 = vmatprep.subr.bf16.mxu0 0
        %913 = vmatpush1.bf16.msra.mxu0 0
        %914 = vmatprep.subr.bf16.mxu0 0
        %915 = vmatpush1.bf16.msra.mxu0 0
        %916 = vmatprep.subr.bf16.mxu0 0
        %917 = vmatpush1.bf16.msra.mxu0 0
        %918 = vmatprep.subr.bf16.mxu0 0
        %919 = vmatpush1.bf16.msra.mxu0 0
        %920 = vmatprep.subr.bf16.mxu0 0
        %921 = vmatpush1.bf16.msra.mxu0 0
        %922 = vmatprep.subr.bf16.mxu0 0
        %923 = vmatpush1.bf16.msra.mxu0 0
        %924 = vmatprep.subr.bf16.mxu0 0
        %925 = vmatpush1.bf16.msra.mxu0 0
        %926 = vmatprep.subr.bf16.mxu0 0
        %927 = vmatpush1.bf16.msra.mxu0 0
        %928 = vmatprep.subr.bf16.mxu0 0
        %929 = vmatpush1.bf16.msra.mxu0 0
        %930 = vmatprep.subr.bf16.mxu0 0
        %931 = vmatpush1.bf16.msra.mxu0 0
        %932 = vmatprep.subr.bf16.mxu0 0
        %933 = vmatpush1.bf16.msra.mxu0 0
        %934 = vmatprep.subr.bf16.mxu0 0
        %935 = vmatpush1.bf16.msra.mxu0 0
        %936 = vmatprep.subr.bf16.mxu0 0
        %937 = vmatpush1.bf16.msra.mxu0 0
        %938 = vmatprep.subr.bf16.mxu0 0
        %939 = vmatpush1.bf16.msra.mxu0 0
        %940 = vmatprep.mubr.bf16.mxu0 0
        %941 = vmatmul.mubr.bf16.gmra.mrb[0].mxu0 %v882
        %v942 = vpop.f32.mrb[0].mxu0
        %v943 = vadd.f32 0.0, %v942
        %v944 = vpop.f32.mrb[0].mxu0
        %v945 = vpop.f32.mrb[0].mxu0
        %v946 = vadd.f32 0.0, %v945
        %v947 = vpop.f32.mrb[0].mxu0
        %948 = vmatprep.mubr.bf16.mxu0 0
        %949 = vmatmul.mubr.bf16.gmra.mrb[0].mxu0 %v885
        %v950 = vpop.f32.mrb[0].mxu0
        %v951 = vadd.f32 0.0, %v950
        %v952 = vpop.f32.mrb[0].mxu0
        %v953 = vpop.f32.mrb[0].mxu0
        %v954 = vadd.f32 0.0, %v953
        %v955 = vpop.f32.mrb[0].mxu0
        %956 = vmatprep.mubr.bf16.mxu0 0
        %957 = vmatmul.mubr.bf16.gmra.mrb[0].mxu0 %v888
        %v958 = vpop.f32.mrb[0].mxu0
        %v959 = vadd.f32 0.0, %v958
        %v960 = vpop.f32.mrb[0].mxu0
        %v961 = vpop.f32.mrb[0].mxu0
        %v962 = vadd.f32 0.0, %v961
        %v963 = vpop.f32.mrb[0].mxu0
        %964 = vmatprep.mubr.bf16.mxu0 0
        %965 = vmatmul.mubr.bf16.gmra.mrb[0].mxu0 %v891
        %v966 = vpop.f32.mrb[0].mxu0
        %v967 = vadd.f32 0.0, %v966
        %v968 = vpop.f32.mrb[0].mxu0
        %v969 = vpop.f32.mrb[0].mxu0
        %v970 = vadd.f32 0.0, %v969
        %v971 = vpop.f32.mrb[0].mxu0
        %972 = vmatprep.mubr.bf16.mxu0 0
        %973 = vmatmul.mubr.bf16.gmra.mrb[0].mxu0 %v894
        %v974 = vpop.f32.mrb[0].mxu0
        %v975 = vadd.f32 0.0, %v974
        %v976 = vpop.f32.mrb[0].mxu0
        %v977 = vpop.f32.mrb[0].mxu0
        %v978 = vadd.f32 0.0, %v977
        %v979 = vpop.f32.mrb[0].mxu0
        %980 = vmatprep.mubr.bf16.mxu0 0
        %981 = vmatmul.mubr.bf16.gmra.mrb[0].mxu0 %v897
        %v982 = vpop.f32.mrb[0].mxu0
        %v983 = vadd.f32 0.0, %v982
        %v984 = vpop.f32.mrb[0].mxu0
        %v985 = vpop.f32.mrb[0].mxu0
        %v986 = vadd.f32 0.0, %v985
        %v987 = vpop.f32.mrb[0].mxu0
        %988 = vmatprep.mubr.bf16.mxu0 0
        %989 = vmatmul.mubr.bf16.gmra.mrb[0].mxu0 %v900
        %v990 = vpop.f32.mrb[0].mxu0
        %v991 = vadd.f32 0.0, %v990
        %v992 = vpop.f32.mrb[0].mxu0
        %v993 = vpop.f32.mrb[0].mxu0
        %v994 = vadd.f32 0.0, %v993
        %v995 = vpop.f32.mrb[0].mxu0
        %996 = vmatprep.mubr.bf16.mxu0 0
        %997 = vmatmul.mubr.bf16.gmra.mrb[0].mxu0 %v903
        %v998 = vpop.f32.mrb[0].mxu0
        %v999 = vadd.f32 0.0, %v998
        %v1000 = vpop.f32.mrb[0].mxu0
        %v1001 = vpop.f32.mrb[0].mxu0
        %v1002 = vadd.f32 0.0, %v1001
        %v1003 = vpop.f32.mrb[0].mxu0
        %1004 = vdwg.mxu0
        %v1005 = vadd.f32 %v710, %v943
        %v1006 = vadd.f32 %v713, %v946
        %v1007 = vadd.f32 %v718, %v951
        %v1008 = vadd.f32 %v721, %v954
        %v1009 = vadd.f32 %v726, %v959
        %v1010 = vadd.f32 %v729, %v962
        %v1011 = vadd.f32 %v734, %v967
        %v1012 = vadd.f32 %v737, %v970
        %v1013 = vadd.f32 %v742, %v975
        %v1014 = vadd.f32 %v745, %v978
        %v1015 = vadd.f32 %v750, %v983
        %v1016 = vadd.f32 %v753, %v986
        %v1017 = vadd.f32 %v758, %v991
        %v1018 = vadd.f32 %v761, %v994
        %v1019 = vadd.f32 %v766, %v999
        %v1020 = vadd.f32 %v769, %v1002
        %s1021 = scalar_lea.vmem %s203, 12 [#allocation2]
        %v1022 = vld [vmem:[%s1021] sm:$0xf]
        %v1023 = vld [vmem:[%s1021 + $0x4] sm:$0xf]
        %v1024 = vld [vmem:[%s1021 + $0xc] sm:$0xf]
        %v1025 = vld [vmem:[%s1021 + $0x10] sm:$0xf]
        %v1026 = vld [vmem:[%s1021 + $0x18] sm:$0xf]
        %v1027 = vld [vmem:[%s1021 + $0x1c] sm:$0xf]
        %v1028 = vld [vmem:[%s1021 + $0x24] sm:$0xf]
        %v1029 = vld [vmem:[%s1021 + $0x28] sm:$0xf]
        %v1030 = vld [vmem:[%s1021 + $0x30] sm:$0xf]
        %v1031 = vld [vmem:[%s1021 + $0x34] sm:$0xf]
        %v1032 = vld [vmem:[%s1021 + $0x3c] sm:$0xf]
        %v1033 = vld [vmem:[%s1021 + $0x40] sm:$0xf]
        %v1034 = vld [vmem:[%s1021 + $0x48] sm:$0xf]
        %v1035 = vld [vmem:[%s1021 + $0x4c] sm:$0xf]
        %v1036 = vld [vmem:[%s1021 + $0x54] sm:$0xf]
        %v1037 = vld [vmem:[%s1021 + $0x58] sm:$0xf]
        %s1038 = scalar_lea.vmem [#allocation5], 6
        %v1039 = vld [vmem:[%s1038] sm:$0x3]
        %v1056 = vunpack.c.l.b16 %v1022
        %v1057 = vunpack.c.l.b16 %v1023
        %v1058 = vunpack.c.l.b16 %v1024
        %v1059 = vunpack.c.l.b16 %v1025
        %v1060 = vunpack.c.l.b16 %v1026
        %v1061 = vunpack.c.l.b16 %v1027
        %v1062 = vunpack.c.l.b16 %v1028
        %v1063 = vunpack.c.l.b16 %v1029
        %v1064 = vunpack.c.l.b16 %v1030
        %v1065 = vunpack.c.l.b16 %v1031
        %v1066 = vunpack.c.l.b16 %v1032
        %v1067 = vunpack.c.l.b16 %v1033
        %v1068 = vunpack.c.l.b16 %v1034
        %v1069 = vunpack.c.l.b16 %v1035
        %v1070 = vunpack.c.l.b16 %v1036
        %v1071 = vunpack.c.l.b16 %v1037
        %v1072 = vpack.c.b16 %v1057, %v1056
        %v1073 = vpack.c.b16 %v1059, %v1058
        %v1074 = vpack.c.b16 %v1061, %v1060
        %v1075 = vpack.c.b16 %v1063, %v1062
        %v1076 = vpack.c.b16 %v1065, %v1064
        %v1077 = vpack.c.b16 %v1067, %v1066
        %v1078 = vpack.c.b16 %v1069, %v1068
        %v1079 = vpack.c.b16 %v1071, %v1070
        %v1081 = vsel %vm482, %v1072, 0
        %v1084 = vsel %vm482, %v1073, 0
        %v1087 = vsel %vm482, %v1074, 0
        %v1090 = vsel %vm482, %v1075, 0
        %v1093 = vsel %vm482, %v1076, 0
        %v1096 = vsel %vm482, %v1077, 0
        %v1099 = vsel %vm482, %v1078, 0
        %v1102 = vsel %vm482, %v1079, 0
        %v1105 = vsel %vm507, %v1039, 0
        %1107 = vmatprep.subr.bf16.mxu0 0
        %1108 = vmatpush1.bf16.msra.mxu0 %v1105
        %1109 = vmatprep.subr.bf16.mxu0 0
        %1110 = vmatpush1.bf16.msra.mxu0 0
        %1111 = vmatprep.subr.bf16.mxu0 0
        %1112 = vmatpush1.bf16.msra.mxu0 0
        %1113 = vmatprep.subr.bf16.mxu0 0
        %1114 = vmatpush1.bf16.msra.mxu0 0
        %1115 = vmatprep.subr.bf16.mxu0 0
        %1116 = vmatpush1.bf16.msra.mxu0 0
        %1117 = vmatprep.subr.bf16.mxu0 0
        %1118 = vmatpush1.bf16.msra.mxu0 0
        %1119 = vmatprep.subr.bf16.mxu0 0
        %1120 = vmatpush1.bf16.msra.mxu0 0
        %1121 = vmatprep.subr.bf16.mxu0 0
        %1122 = vmatpush1.bf16.msra.mxu0 0
        %1123 = vmatprep.subr.bf16.mxu0 0
        %1124 = vmatpush1.bf16.msra.mxu0 0
        %1125 = vmatprep.subr.bf16.mxu0 0
        %1126 = vmatpush1.bf16.msra.mxu0 0
        %1127 = vmatprep.subr.bf16.mxu0 0
        %1128 = vmatpush1.bf16.msra.mxu0 0
        %1129 = vmatprep.subr.bf16.mxu0 0
        %1130 = vmatpush1.bf16.msra.mxu0 0
        %1131 = vmatprep.subr.bf16.mxu0 0
        %1132 = vmatpush1.bf16.msra.mxu0 0
        %1133 = vmatprep.subr.bf16.mxu0 0
        %1134 = vmatpush1.bf16.msra.mxu0 0
        %1135 = vmatprep.subr.bf16.mxu0 0
        %1136 = vmatpush1.bf16.msra.mxu0 0
        %1137 = vmatprep.subr.bf16.mxu0 0
        %1138 = vmatpush1.bf16.msra.mxu0 0
        %1139 = vmatprep.mubr.bf16.mxu0 0
        %1140 = vmatmul.mubr.bf16.gmra.mrb[0].mxu0 %v1081
        %v1141 = vpop.f32.mrb[0].mxu0
        %v1142 = vadd.f32 0.0, %v1141
        %v1143 = vpop.f32.mrb[0].mxu0
        %v1144 = vpop.f32.mrb[0].mxu0
        %v1145 = vadd.f32 0.0, %v1144
        %v1146 = vpop.f32.mrb[0].mxu0
        %1147 = vmatprep.mubr.bf16.mxu0 0
        %1148 = vmatmul.mubr.bf16.gmra.mrb[0].mxu0 %v1084
        %v1149 = vpop.f32.mrb[0].mxu0
        %v1150 = vadd.f32 0.0, %v1149
        %v1151 = vpop.f32.mrb[0].mxu0
        %v1152 = vpop.f32.mrb[0].mxu0
        %v1153 = vadd.f32 0.0, %v1152
        %v1154 = vpop.f32.mrb[0].mxu0
        %1155 = vmatprep.mubr.bf16.mxu0 0
        %1156 = vmatmul.mubr.bf16.gmra.mrb[0].mxu0 %v1087
        %v1157 = vpop.f32.mrb[0].mxu0
        %v1158 = vadd.f32 0.0, %v1157
        %v1159 = vpop.f32.mrb[0].mxu0
        %v1160 = vpop.f32.mrb[0].mxu0
        %v1161 = vadd.f32 0.0, %v1160
        %v1162 = vpop.f32.mrb[0].mxu0
        %1163 = vmatprep.mubr.bf16.mxu0 0
        %1164 = vmatmul.mubr.bf16.gmra.mrb[0].mxu0 %v1090
        %v1165 = vpop.f32.mrb[0].mxu0
        %v1166 = vadd.f32 0.0, %v1165
        %v1167 = vpop.f32.mrb[0].mxu0
        %v1168 = vpop.f32.mrb[0].mxu0
        %v1169 = vadd.f32 0.0, %v1168
        %v1170 = vpop.f32.mrb[0].mxu0
        %1171 = vmatprep.mubr.bf16.mxu0 0
        %1172 = vmatmul.mubr.bf16.gmra.mrb[0].mxu0 %v1093
        %v1173 = vpop.f32.mrb[0].mxu0
        %v1174 = vadd.f32 0.0, %v1173
        %v1175 = vpop.f32.mrb[0].mxu0
        %v1176 = vpop.f32.mrb[0].mxu0
        %v1177 = vadd.f32 0.0, %v1176
        %v1178 = vpop.f32.mrb[0].mxu0
        %1179 = vmatprep.mubr.bf16.mxu0 0
        %1180 = vmatmul.mubr.bf16.gmra.mrb[0].mxu0 %v1096
        %v1181 = vpop.f32.mrb[0].mxu0
        %v1182 = vadd.f32 0.0, %v1181
        %v1183 = vpop.f32.mrb[0].mxu0
        %v1184 = vpop.f32.mrb[0].mxu0
        %v1185 = vadd.f32 0.0, %v1184
        %v1186 = vpop.f32.mrb[0].mxu0
        %1187 = vmatprep.mubr.bf16.mxu0 0
        %1188 = vmatmul.mubr.bf16.gmra.mrb[0].mxu0 %v1099
        %v1189 = vpop.f32.mrb[0].mxu0
        %v1190 = vadd.f32 0.0, %v1189
        %v1191 = vpop.f32.mrb[0].mxu0
        %v1192 = vpop.f32.mrb[0].mxu0
        %v1193 = vadd.f32 0.0, %v1192
        %v1194 = vpop.f32.mrb[0].mxu0
        %1195 = vmatprep.mubr.bf16.mxu0 0
        %1196 = vmatmul.mubr.bf16.gmra.mrb[0].mxu0 %v1102
        %v1197 = vpop.f32.mrb[0].mxu0
        %v1198 = vadd.f32 0.0, %v1197
        %v1199 = vpop.f32.mrb[0].mxu0
        %v1200 = vpop.f32.mrb[0].mxu0
        %v1201 = vadd.f32 0.0, %v1200
        %v1202 = vpop.f32.mrb[0].mxu0
        %1203 = vdwg.mxu0
        %v1204 = vadd.f32 %v1005, %v1142
        %v1205 = vadd.f32 %v1006, %v1145
        %v1206 = vadd.f32 %v1007, %v1150
        %v1207 = vadd.f32 %v1008, %v1153
        %v1208 = vadd.f32 %v1009, %v1158
        %v1209 = vadd.f32 %v1010, %v1161
        %v1210 = vadd.f32 %v1011, %v1166
        %v1211 = vadd.f32 %v1012, %v1169
        %v1212 = vadd.f32 %v1013, %v1174
        %v1213 = vadd.f32 %v1014, %v1177
        %v1214 = vadd.f32 %v1015, %v1182
        %v1215 = vadd.f32 %v1016, %v1185
        %v1216 = vadd.f32 %v1017, %v1190
        %v1217 = vadd.f32 %v1018, %v1193
        %v1218 = vadd.f32 %v1019, %v1198
        %v1219 = vadd.f32 %v1020, %v1201
        %v1220 = vld [vmem:[%s1021] sm:$0xf]
        %v1221 = vld [vmem:[%s1021 + $0x4] sm:$0xf]
        %v1222 = vld [vmem:[%s1021 + $0x8] sm:$0x1]
        %v1223 = vld [vmem:[%s1021 + $0xc] sm:$0xf]
        %v1224 = vld [vmem:[%s1021 + $0x10] sm:$0xf]
        %v1225 = vld [vmem:[%s1021 + $0x14] sm:$0x1]
        %v1226 = vld [vmem:[%s1021 + $0x18] sm:$0xf]
        %v1227 = vld [vmem:[%s1021 + $0x1c] sm:$0xf]
        %v1228 = vld [vmem:[%s1021 + $0x20] sm:$0x1]
        %v1229 = vld [vmem:[%s1021 + $0x24] sm:$0xf]
        %v1230 = vld [vmem:[%s1021 + $0x28] sm:$0xf]
        %v1231 = vld [vmem:[%s1021 + $0x2c] sm:$0x1]
        %v1232 = vld [vmem:[%s1021 + $0x30] sm:$0xf]
        %v1233 = vld [vmem:[%s1021 + $0x34] sm:$0xf]
        %v1234 = vld [vmem:[%s1021 + $0x38] sm:$0x1]
        %v1235 = vld [vmem:[%s1021 + $0x3c] sm:$0xf]
        %v1236 = vld [vmem:[%s1021 + $0x40] sm:$0xf]
        %v1237 = vld [vmem:[%s1021 + $0x44] sm:$0x1]
        %v1238 = vld [vmem:[%s1021 + $0x48] sm:$0xf]
        %v1239 = vld [vmem:[%s1021 + $0x4c] sm:$0xf]
        %v1240 = vld [vmem:[%s1021 + $0x50] sm:$0x1]
        %v1241 = vld [vmem:[%s1021 + $0x54] sm:$0xf]
        %v1242 = vld [vmem:[%s1021 + $0x58] sm:$0xf]
        %v1243 = vld [vmem:[%s1021 + $0x5c] sm:$0x1]
        %v1245 = vshrl.u32 %v1220, 16
        %v1247 = vrot.slane %v1245, 4
        %v1248 = vshll.u32 %v1220, 16
        %v1250 = vrot.slane %v1248, 5
        %v1251 = vor.u32 %v1247, %v1250
        %v1252 = vrot.slane %v1251, 4
        %v1254 = vshll.u32 %v1221, 16
        %v1256 = vrot.slane %v1254, 5
        %v1257 = vsel %vm263, %v1252, %v1256
        %v1258 = vshrl.u32 %v1221, 16
        %v1260 = vrot.slane %v1258, 4
        %v1261 = vor.u32 %v1260, %v1256
        %v1262 = vrot.slane %v1261, 4
        %v1264 = vshll.u32 %v1222, 16
        %v1266 = vrot.slane %v1264, 5
        %v1267 = vsel %vm263, %v1262, %v1266
        %v1269 = vshrl.u32 %v1223, 16
        %v1271 = vrot.slane %v1269, 4
        %v1272 = vshll.u32 %v1223, 16
        %v1274 = vrot.slane %v1272, 5
        %v1275 = vor.u32 %v1271, %v1274
        %v1276 = vrot.slane %v1275, 4
        %v1278 = vshll.u32 %v1224, 16
        %v1280 = vrot.slane %v1278, 5
        %v1281 = vsel %vm263, %v1276, %v1280
        %v1282 = vshrl.u32 %v1224, 16
        %v1284 = vrot.slane %v1282, 4
        %v1285 = vor.u32 %v1284, %v1280
        %v1286 = vrot.slane %v1285, 4
        %v1288 = vshll.u32 %v1225, 16
        %v1290 = vrot.slane %v1288, 5
        %v1291 = vsel %vm263, %v1286, %v1290
        %v1293 = vshrl.u32 %v1226, 16
        %v1295 = vrot.slane %v1293, 4
        %v1296 = vshll.u32 %v1226, 16
        %v1298 = vrot.slane %v1296, 5
        %v1299 = vor.u32 %v1295, %v1298
        %v1300 = vrot.slane %v1299, 4
        %v1302 = vshll.u32 %v1227, 16
        %v1304 = vrot.slane %v1302, 5
        %v1305 = vsel %vm263, %v1300, %v1304
        %v1306 = vshrl.u32 %v1227, 16
        %v1308 = vrot.slane %v1306, 4
        %v1309 = vor.u32 %v1308, %v1304
        %v1310 = vrot.slane %v1309, 4
        %v1312 = vshll.u32 %v1228, 16
        %v1314 = vrot.slane %v1312, 5
        %v1315 = vsel %vm263, %v1310, %v1314
        %v1317 = vshrl.u32 %v1229, 16
        %v1319 = vrot.slane %v1317, 4
        %v1320 = vshll.u32 %v1229, 16
        %v1322 = vrot.slane %v1320, 5
        %v1323 = vor.u32 %v1319, %v1322
        %v1324 = vrot.slane %v1323, 4
        %v1326 = vshll.u32 %v1230, 16
        %v1328 = vrot.slane %v1326, 5
        %v1329 = vsel %vm263, %v1324, %v1328
        %v1330 = vshrl.u32 %v1230, 16
        %v1332 = vrot.slane %v1330, 4
        %v1333 = vor.u32 %v1332, %v1328
        %v1334 = vrot.slane %v1333, 4
        %v1336 = vshll.u32 %v1231, 16
        %v1338 = vrot.slane %v1336, 5
        %v1339 = vsel %vm263, %v1334, %v1338
        %v1341 = vshrl.u32 %v1232, 16
        %v1343 = vrot.slane %v1341, 4
        %v1344 = vshll.u32 %v1232, 16
        %v1346 = vrot.slane %v1344, 5
        %v1347 = vor.u32 %v1343, %v1346
        %v1348 = vrot.slane %v1347, 4
        %v1350 = vshll.u32 %v1233, 16
        %v1352 = vrot.slane %v1350, 5
        %v1353 = vsel %vm263, %v1348, %v1352
        %v1354 = vshrl.u32 %v1233, 16
        %v1356 = vrot.slane %v1354, 4
        %v1357 = vor.u32 %v1356, %v1352
        %v1358 = vrot.slane %v1357, 4
        %v1360 = vshll.u32 %v1234, 16
        %v1362 = vrot.slane %v1360, 5
        %v1363 = vsel %vm263, %v1358, %v1362
        %v1365 = vshrl.u32 %v1235, 16
        %v1367 = vrot.slane %v1365, 4
        %v1368 = vshll.u32 %v1235, 16
        %v1370 = vrot.slane %v1368, 5
        %v1371 = vor.u32 %v1367, %v1370
        %v1372 = vrot.slane %v1371, 4
        %v1374 = vshll.u32 %v1236, 16
        %v1376 = vrot.slane %v1374, 5
        %v1377 = vsel %vm263, %v1372, %v1376
        %v1378 = vshrl.u32 %v1236, 16
        %v1380 = vrot.slane %v1378, 4
        %v1381 = vor.u32 %v1380, %v1376
        %v1382 = vrot.slane %v1381, 4
        %v1384 = vshll.u32 %v1237, 16
        %v1386 = vrot.slane %v1384, 5
        %v1387 = vsel %vm263, %v1382, %v1386
        %v1389 = vshrl.u32 %v1238, 16
        %v1391 = vrot.slane %v1389, 4
        %v1392 = vshll.u32 %v1238, 16
        %v1394 = vrot.slane %v1392, 5
        %v1395 = vor.u32 %v1391, %v1394
        %v1396 = vrot.slane %v1395, 4
        %v1398 = vshll.u32 %v1239, 16
        %v1400 = vrot.slane %v1398, 5
        %v1401 = vsel %vm263, %v1396, %v1400
        %v1402 = vshrl.u32 %v1239, 16
        %v1404 = vrot.slane %v1402, 4
        %v1405 = vor.u32 %v1404, %v1400
        %v1406 = vrot.slane %v1405, 4
        %v1408 = vshll.u32 %v1240, 16
        %v1410 = vrot.slane %v1408, 5
        %v1411 = vsel %vm263, %v1406, %v1410
        %v1413 = vshrl.u32 %v1241, 16
        %v1415 = vrot.slane %v1413, 4
        %v1416 = vshll.u32 %v1241, 16
        %v1418 = vrot.slane %v1416, 5
        %v1419 = vor.u32 %v1415, %v1418
        %v1420 = vrot.slane %v1419, 4
        %v1422 = vshll.u32 %v1242, 16
        %v1424 = vrot.slane %v1422, 5
        %v1425 = vsel %vm263, %v1420, %v1424
        %v1426 = vshrl.u32 %v1242, 16
        %v1428 = vrot.slane %v1426, 4
        %v1429 = vor.u32 %v1428, %v1424
        %v1430 = vrot.slane %v1429, 4
        %v1432 = vshll.u32 %v1243, 16
        %v1434 = vrot.slane %v1432, 5
        %v1435 = vsel %vm263, %v1430, %v1434
        %s1436 = scalar_lea.vmem [#allocation5], 8
        %v1437 = vld [vmem:[%s1436] sm:$0x3]
        %v1438 = vunpack.c.l.b16 %v1257
        %v1439 = vunpack.c.l.b16 %v1267
        %v1440 = vunpack.c.l.b16 %v1281
        %v1441 = vunpack.c.l.b16 %v1291
        %v1442 = vunpack.c.l.b16 %v1305
        %v1443 = vunpack.c.l.b16 %v1315
        %v1444 = vunpack.c.l.b16 %v1329
        %v1445 = vunpack.c.l.b16 %v1339
        %v1446 = vunpack.c.l.b16 %v1353
        %v1447 = vunpack.c.l.b16 %v1363
        %v1448 = vunpack.c.l.b16 %v1377
        %v1449 = vunpack.c.l.b16 %v1387
        %v1450 = vunpack.c.l.b16 %v1401
        %v1451 = vunpack.c.l.b16 %v1411
        %v1452 = vunpack.c.l.b16 %v1425
        %v1453 = vunpack.c.l.b16 %v1435
        %v1454 = vpack.c.b16 %v1439, %v1438
        %v1455 = vpack.c.b16 %v1441, %v1440
        %v1456 = vpack.c.b16 %v1443, %v1442
        %v1457 = vpack.c.b16 %v1445, %v1444
        %v1458 = vpack.c.b16 %v1447, %v1446
        %v1459 = vpack.c.b16 %v1449, %v1448
        %v1460 = vpack.c.b16 %v1451, %v1450
        %v1461 = vpack.c.b16 %v1453, %v1452
        %v1463 = vsel %vm482, %v1454, 0
        %v1466 = vsel %vm482, %v1455, 0
        %v1469 = vsel %vm482, %v1456, 0
        %v1472 = vsel %vm482, %v1457, 0
        %v1475 = vsel %vm482, %v1458, 0
        %v1478 = vsel %vm482, %v1459, 0
        %v1481 = vsel %vm482, %v1460, 0
        %v1484 = vsel %vm482, %v1461, 0
        %v1487 = vsel %vm507, %v1437, 0
        %1489 = vmatprep.subr.bf16.mxu0 0
        %1490 = vmatpush1.bf16.msra.mxu0 %v1487
        %1491 = vmatprep.subr.bf16.mxu0 0
        %1492 = vmatpush1.bf16.msra.mxu0 0
        %1493 = vmatprep.subr.bf16.mxu0 0
        %1494 = vmatpush1.bf16.msra.mxu0 0
        %1495 = vmatprep.subr.bf16.mxu0 0
        %1496 = vmatpush1.bf16.msra.mxu0 0
        %1497 = vmatprep.subr.bf16.mxu0 0
        %1498 = vmatpush1.bf16.msra.mxu0 0
        %1499 = vmatprep.subr.bf16.mxu0 0
        %1500 = vmatpush1.bf16.msra.mxu0 0
        %1501 = vmatprep.subr.bf16.mxu0 0
        %1502 = vmatpush1.bf16.msra.mxu0 0
        %1503 = vmatprep.subr.bf16.mxu0 0
        %1504 = vmatpush1.bf16.msra.mxu0 0
        %1505 = vmatprep.subr.bf16.mxu0 0
        %1506 = vmatpush1.bf16.msra.mxu0 0
        %1507 = vmatprep.subr.bf16.mxu0 0
        %1508 = vmatpush1.bf16.msra.mxu0 0
        %1509 = vmatprep.subr.bf16.mxu0 0
        %1510 = vmatpush1.bf16.msra.mxu0 0
        %1511 = vmatprep.subr.bf16.mxu0 0
        %1512 = vmatpush1.bf16.msra.mxu0 0
        %1513 = vmatprep.subr.bf16.mxu0 0
        %1514 = vmatpush1.bf16.msra.mxu0 0
        %1515 = vmatprep.subr.bf16.mxu0 0
        %1516 = vmatpush1.bf16.msra.mxu0 0
        %1517 = vmatprep.subr.bf16.mxu0 0
        %1518 = vmatpush1.bf16.msra.mxu0 0
        %1519 = vmatprep.subr.bf16.mxu0 0
        %1520 = vmatpush1.bf16.msra.mxu0 0
        %1521 = vmatprep.mubr.bf16.mxu0 0
        %1522 = vmatmul.mubr.bf16.gmra.mrb[0].mxu0 %v1463
        %v1523 = vpop.f32.mrb[0].mxu0
        %v1524 = vadd.f32 0.0, %v1523
        %v1525 = vpop.f32.mrb[0].mxu0
        %v1526 = vpop.f32.mrb[0].mxu0
        %v1527 = vadd.f32 0.0, %v1526
        %v1528 = vpop.f32.mrb[0].mxu0
        %1529 = vmatprep.mubr.bf16.mxu0 0
        %1530 = vmatmul.mubr.bf16.gmra.mrb[0].mxu0 %v1466
        %v1531 = vpop.f32.mrb[0].mxu0
        %v1532 = vadd.f32 0.0, %v1531
        %v1533 = vpop.f32.mrb[0].mxu0
        %v1534 = vpop.f32.mrb[0].mxu0
        %v1535 = vadd.f32 0.0, %v1534
        %v1536 = vpop.f32.mrb[0].mxu0
        %1537 = vmatprep.mubr.bf16.mxu0 0
        %1538 = vmatmul.mubr.bf16.gmra.mrb[0].mxu0 %v1469
        %v1539 = vpop.f32.mrb[0].mxu0
        %v1540 = vadd.f32 0.0, %v1539
        %v1541 = vpop.f32.mrb[0].mxu0
        %v1542 = vpop.f32.mrb[0].mxu0
        %v1543 = vadd.f32 0.0, %v1542
        %v1544 = vpop.f32.mrb[0].mxu0
        %1545 = vmatprep.mubr.bf16.mxu0 0
        %1546 = vmatmul.mubr.bf16.gmra.mrb[0].mxu0 %v1472
        %v1547 = vpop.f32.mrb[0].mxu0
        %v1548 = vadd.f32 0.0, %v1547
        %v1549 = vpop.f32.mrb[0].mxu0
        %v1550 = vpop.f32.mrb[0].mxu0
        %v1551 = vadd.f32 0.0, %v1550
        %v1552 = vpop.f32.mrb[0].mxu0
        %1553 = vmatprep.mubr.bf16.mxu0 0
        %1554 = vmatmul.mubr.bf16.gmra.mrb[0].mxu0 %v1475
        %v1555 = vpop.f32.mrb[0].mxu0
        %v1556 = vadd.f32 0.0, %v1555
        %v1557 = vpop.f32.mrb[0].mxu0
        %v1558 = vpop.f32.mrb[0].mxu0
        %v1559 = vadd.f32 0.0, %v1558
        %v1560 = vpop.f32.mrb[0].mxu0
        %1561 = vmatprep.mubr.bf16.mxu0 0
        %1562 = vmatmul.mubr.bf16.gmra.mrb[0].mxu0 %v1478
        %v1563 = vpop.f32.mrb[0].mxu0
        %v1564 = vadd.f32 0.0, %v1563
        %v1565 = vpop.f32.mrb[0].mxu0
        %v1566 = vpop.f32.mrb[0].mxu0
        %v1567 = vadd.f32 0.0, %v1566
        %v1568 = vpop.f32.mrb[0].mxu0
        %1569 = vmatprep.mubr.bf16.mxu0 0
        %1570 = vmatmul.mubr.bf16.gmra.mrb[0].mxu0 %v1481
        %v1571 = vpop.f32.mrb[0].mxu0
        %v1572 = vadd.f32 0.0, %v1571
        %v1573 = vpop.f32.mrb[0].mxu0
        %v1574 = vpop.f32.mrb[0].mxu0
        %v1575 = vadd.f32 0.0, %v1574
        %v1576 = vpop.f32.mrb[0].mxu0
        %1577 = vmatprep.mubr.bf16.mxu0 0
        %1578 = vmatmul.mubr.bf16.gmra.mrb[0].mxu0 %v1484
        %v1579 = vpop.f32.mrb[0].mxu0
        %v1580 = vadd.f32 0.0, %v1579
        %v1581 = vpop.f32.mrb[0].mxu0
        %v1582 = vpop.f32.mrb[0].mxu0
        %v1583 = vadd.f32 0.0, %v1582
        %v1584 = vpop.f32.mrb[0].mxu0
        %1585 = vdwg.mxu0
        %v1586 = vadd.f32 %v1204, %v1524
        %v1587 = vadd.f32 %v1205, %v1527
        %v1588 = vadd.f32 %v1206, %v1532
        %v1589 = vadd.f32 %v1207, %v1535
        %v1590 = vadd.f32 %v1208, %v1540
        %v1591 = vadd.f32 %v1209, %v1543
        %v1592 = vadd.f32 %v1210, %v1548
        %v1593 = vadd.f32 %v1211, %v1551
        %v1594 = vadd.f32 %v1212, %v1556
        %v1595 = vadd.f32 %v1213, %v1559
        %v1596 = vadd.f32 %v1214, %v1564
        %v1597 = vadd.f32 %v1215, %v1567
        %v1598 = vadd.f32 %v1216, %v1572
        %v1599 = vadd.f32 %v1217, %v1575
        %v1600 = vadd.f32 %v1218, %v1580
        %v1601 = vadd.f32 %v1219, %v1583
        %v1602 = vld [vmem:[%s1021] sm:$0xe]
        %v1603 = vld [vmem:[%s1021 + $0xc] sm:$0xe]
        %v1604 = vld [vmem:[%s1021 + $0x18] sm:$0xe]
        %v1605 = vld [vmem:[%s1021 + $0x24] sm:$0xe]
        %v1606 = vld [vmem:[%s1021 + $0x30] sm:$0xe]
        %v1607 = vld [vmem:[%s1021 + $0x3c] sm:$0xe]
        %v1608 = vld [vmem:[%s1021 + $0x48] sm:$0xe]
        %v1609 = vld [vmem:[%s1021 + $0x54] sm:$0xe]
        %v1634 = vrot.slane %v1602, 5
        %v1635 = vrot.slane %v1634, 4
        %v1636 = vrot.slane %v1221, 5
        %v1637 = vsel %vm798, %v1635, %v1636
        %v1638 = vrot.slane %v1636, 4
        %v1639 = vrot.slane %v1222, 5
        %v1640 = vsel %vm798, %v1638, %v1639
        %v1641 = vrot.slane %v1603, 5
        %v1642 = vrot.slane %v1641, 4
        %v1643 = vrot.slane %v1224, 5
        %v1644 = vsel %vm798, %v1642, %v1643
        %v1645 = vrot.slane %v1643, 4
        %v1646 = vrot.slane %v1225, 5
        %v1647 = vsel %vm798, %v1645, %v1646
        %v1648 = vrot.slane %v1604, 5
        %v1649 = vrot.slane %v1648, 4
        %v1650 = vrot.slane %v1227, 5
        %v1651 = vsel %vm798, %v1649, %v1650
        %v1652 = vrot.slane %v1650, 4
        %v1653 = vrot.slane %v1228, 5
        %v1654 = vsel %vm798, %v1652, %v1653
        %v1655 = vrot.slane %v1605, 5
        %v1656 = vrot.slane %v1655, 4
        %v1657 = vrot.slane %v1230, 5
        %v1658 = vsel %vm798, %v1656, %v1657
        %v1659 = vrot.slane %v1657, 4
        %v1660 = vrot.slane %v1231, 5
        %v1661 = vsel %vm798, %v1659, %v1660
        %v1662 = vrot.slane %v1606, 5
        %v1663 = vrot.slane %v1662, 4
        %v1664 = vrot.slane %v1233, 5
        %v1665 = vsel %vm798, %v1663, %v1664
        %v1666 = vrot.slane %v1664, 4
        %v1667 = vrot.slane %v1234, 5
        %v1668 = vsel %vm798, %v1666, %v1667
        %v1669 = vrot.slane %v1607, 5
        %v1670 = vrot.slane %v1669, 4
        %v1671 = vrot.slane %v1236, 5
        %v1672 = vsel %vm798, %v1670, %v1671
        %v1673 = vrot.slane %v1671, 4
        %v1674 = vrot.slane %v1237, 5
        %v1675 = vsel %vm798, %v1673, %v1674
        %v1676 = vrot.slane %v1608, 5
        %v1677 = vrot.slane %v1676, 4
        %v1678 = vrot.slane %v1239, 5
        %v1679 = vsel %vm798, %v1677, %v1678
        %v1680 = vrot.slane %v1678, 4
        %v1681 = vrot.slane %v1240, 5
        %v1682 = vsel %vm798, %v1680, %v1681
        %v1683 = vrot.slane %v1609, 5
        %v1684 = vrot.slane %v1683, 4
        %v1685 = vrot.slane %v1242, 5
        %v1686 = vsel %vm798, %v1684, %v1685
        %v1687 = vrot.slane %v1685, 4
        %v1688 = vrot.slane %v1243, 5
        %v1689 = vsel %vm798, %v1687, %v1688
        %s1690 = scalar_lea.vmem [#allocation5], 10
        %v1691 = vld [vmem:[%s1690] sm:$0x3]
        %v1692 = vunpack.c.l.b16 %v1637
        %v1693 = vunpack.c.l.b16 %v1640
        %v1694 = vunpack.c.l.b16 %v1644
        %v1695 = vunpack.c.l.b16 %v1647
        %v1696 = vunpack.c.l.b16 %v1651
        %v1697 = vunpack.c.l.b16 %v1654
        %v1698 = vunpack.c.l.b16 %v1658
        %v1699 = vunpack.c.l.b16 %v1661
        %v1700 = vunpack.c.l.b16 %v1665
        %v1701 = vunpack.c.l.b16 %v1668
        %v1702 = vunpack.c.l.b16 %v1672
        %v1703 = vunpack.c.l.b16 %v1675
        %v1704 = vunpack.c.l.b16 %v1679
        %v1705 = vunpack.c.l.b16 %v1682
        %v1706 = vunpack.c.l.b16 %v1686
        %v1707 = vunpack.c.l.b16 %v1689
        %v1708 = vpack.c.b16 %v1693, %v1692
        %v1709 = vpack.c.b16 %v1695, %v1694
        %v1710 = vpack.c.b16 %v1697, %v1696
        %v1711 = vpack.c.b16 %v1699, %v1698
        %v1712 = vpack.c.b16 %v1701, %v1700
        %v1713 = vpack.c.b16 %v1703, %v1702
        %v1714 = vpack.c.b16 %v1705, %v1704
        %v1715 = vpack.c.b16 %v1707, %v1706
        %v1717 = vsel %vm482, %v1708, 0
        %v1720 = vsel %vm482, %v1709, 0
        %v1723 = vsel %vm482, %v1710, 0
        %v1726 = vsel %vm482, %v1711, 0
        %v1729 = vsel %vm482, %v1712, 0
        %v1732 = vsel %vm482, %v1713, 0
        %v1735 = vsel %vm482, %v1714, 0
        %v1738 = vsel %vm482, %v1715, 0
        %v1741 = vsel %vm507, %v1691, 0
        %1743 = vmatprep.subr.bf16.mxu0 0
        %1744 = vmatpush1.bf16.msra.mxu0 %v1741
        %1745 = vmatprep.subr.bf16.mxu0 0
        %1746 = vmatpush1.bf16.msra.mxu0 0
        %1747 = vmatprep.subr.bf16.mxu0 0
        %1748 = vmatpush1.bf16.msra.mxu0 0
        %1749 = vmatprep.subr.bf16.mxu0 0
        %1750 = vmatpush1.bf16.msra.mxu0 0
        %1751 = vmatprep.subr.bf16.mxu0 0
        %1752 = vmatpush1.bf16.msra.mxu0 0
        %1753 = vmatprep.subr.bf16.mxu0 0
        %1754 = vmatpush1.bf16.msra.mxu0 0
        %1755 = vmatprep.subr.bf16.mxu0 0
        %1756 = vmatpush1.bf16.msra.mxu0 0
        %1757 = vmatprep.subr.bf16.mxu0 0
        %1758 = vmatpush1.bf16.msra.mxu0 0
        %1759 = vmatprep.subr.bf16.mxu0 0
        %1760 = vmatpush1.bf16.msra.mxu0 0
        %1761 = vmatprep.subr.bf16.mxu0 0
        %1762 = vmatpush1.bf16.msra.mxu0 0
        %1763 = vmatprep.subr.bf16.mxu0 0
        %1764 = vmatpush1.bf16.msra.mxu0 0
        %1765 = vmatprep.subr.bf16.mxu0 0
        %1766 = vmatpush1.bf16.msra.mxu0 0
        %1767 = vmatprep.subr.bf16.mxu0 0
        %1768 = vmatpush1.bf16.msra.mxu0 0
        %1769 = vmatprep.subr.bf16.mxu0 0
        %1770 = vmatpush1.bf16.msra.mxu0 0
        %1771 = vmatprep.subr.bf16.mxu0 0
        %1772 = vmatpush1.bf16.msra.mxu0 0
        %1773 = vmatprep.subr.bf16.mxu0 0
        %1774 = vmatpush1.bf16.msra.mxu0 0
        %1775 = vmatprep.mubr.bf16.mxu0 0
        %1776 = vmatmul.mubr.bf16.gmra.mrb[0].mxu0 %v1717
        %v1777 = vpop.f32.mrb[0].mxu0
        %v1778 = vadd.f32 0.0, %v1777
        %v1779 = vpop.f32.mrb[0].mxu0
        %v1780 = vpop.f32.mrb[0].mxu0
        %v1781 = vadd.f32 0.0, %v1780
        %v1782 = vpop.f32.mrb[0].mxu0
        %1783 = vmatprep.mubr.bf16.mxu0 0
        %1784 = vmatmul.mubr.bf16.gmra.mrb[0].mxu0 %v1720
        %v1785 = vpop.f32.mrb[0].mxu0
        %v1786 = vadd.f32 0.0, %v1785
        %v1787 = vpop.f32.mrb[0].mxu0
        %v1788 = vpop.f32.mrb[0].mxu0
        %v1789 = vadd.f32 0.0, %v1788
        %v1790 = vpop.f32.mrb[0].mxu0
        %1791 = vmatprep.mubr.bf16.mxu0 0
        %1792 = vmatmul.mubr.bf16.gmra.mrb[0].mxu0 %v1723
        %v1793 = vpop.f32.mrb[0].mxu0
        %v1794 = vadd.f32 0.0, %v1793
        %v1795 = vpop.f32.mrb[0].mxu0
        %v1796 = vpop.f32.mrb[0].mxu0
        %v1797 = vadd.f32 0.0, %v1796
        %v1798 = vpop.f32.mrb[0].mxu0
        %1799 = vmatprep.mubr.bf16.mxu0 0
        %1800 = vmatmul.mubr.bf16.gmra.mrb[0].mxu0 %v1726
        %v1801 = vpop.f32.mrb[0].mxu0
        %v1802 = vadd.f32 0.0, %v1801
        %v1803 = vpop.f32.mrb[0].mxu0
        %v1804 = vpop.f32.mrb[0].mxu0
        %v1805 = vadd.f32 0.0, %v1804
        %v1806 = vpop.f32.mrb[0].mxu0
        %1807 = vmatprep.mubr.bf16.mxu0 0
        %1808 = vmatmul.mubr.bf16.gmra.mrb[0].mxu0 %v1729
        %v1809 = vpop.f32.mrb[0].mxu0
        %v1810 = vadd.f32 0.0, %v1809
        %v1811 = vpop.f32.mrb[0].mxu0
        %v1812 = vpop.f32.mrb[0].mxu0
        %v1813 = vadd.f32 0.0, %v1812
        %v1814 = vpop.f32.mrb[0].mxu0
        %1815 = vmatprep.mubr.bf16.mxu0 0
        %1816 = vmatmul.mubr.bf16.gmra.mrb[0].mxu0 %v1732
        %v1817 = vpop.f32.mrb[0].mxu0
        %v1818 = vadd.f32 0.0, %v1817
        %v1819 = vpop.f32.mrb[0].mxu0
        %v1820 = vpop.f32.mrb[0].mxu0
        %v1821 = vadd.f32 0.0, %v1820
        %v1822 = vpop.f32.mrb[0].mxu0
        %1823 = vmatprep.mubr.bf16.mxu0 0
        %1824 = vmatmul.mubr.bf16.gmra.mrb[0].mxu0 %v1735
        %v1825 = vpop.f32.mrb[0].mxu0
        %v1826 = vadd.f32 0.0, %v1825
        %v1827 = vpop.f32.mrb[0].mxu0
        %v1828 = vpop.f32.mrb[0].mxu0
        %v1829 = vadd.f32 0.0, %v1828
        %v1830 = vpop.f32.mrb[0].mxu0
        %1831 = vmatprep.mubr.bf16.mxu0 0
        %1832 = vmatmul.mubr.bf16.gmra.mrb[0].mxu0 %v1738
        %v1833 = vpop.f32.mrb[0].mxu0
        %v1834 = vadd.f32 0.0, %v1833
        %v1835 = vpop.f32.mrb[0].mxu0
        %v1836 = vpop.f32.mrb[0].mxu0
        %v1837 = vadd.f32 0.0, %v1836
        %v1838 = vpop.f32.mrb[0].mxu0
        %1839 = vdwg.mxu0
        %v1840 = vadd.f32 %v1586, %v1778
        %v1841 = vadd.f32 %v1587, %v1781
        %v1842 = vadd.f32 %v1588, %v1786
        %v1843 = vadd.f32 %v1589, %v1789
        %v1844 = vadd.f32 %v1590, %v1794
        %v1845 = vadd.f32 %v1591, %v1797
        %v1846 = vadd.f32 %v1592, %v1802
        %v1847 = vadd.f32 %v1593, %v1805
        %v1848 = vadd.f32 %v1594, %v1810
        %v1849 = vadd.f32 %v1595, %v1813
        %v1850 = vadd.f32 %v1596, %v1818
        %v1851 = vadd.f32 %v1597, %v1821
        %v1852 = vadd.f32 %v1598, %v1826
        %v1853 = vadd.f32 %v1599, %v1829
        %v1854 = vadd.f32 %v1600, %v1834
        %v1855 = vadd.f32 %v1601, %v1837
        %s1856 = scalar_lea.vmem %s203, 24 [#allocation2]
        %v1857 = vld [vmem:[%s1856] sm:$0xf]
        %v1858 = vld [vmem:[%s1856 + $0x4] sm:$0xf]
        %v1859 = vld [vmem:[%s1856 + $0xc] sm:$0xf]
        %v1860 = vld [vmem:[%s1856 + $0x10] sm:$0xf]
        %v1861 = vld [vmem:[%s1856 + $0x18] sm:$0xf]
        %v1862 = vld [vmem:[%s1856 + $0x1c] sm:$0xf]
        %v1863 = vld [vmem:[%s1856 + $0x24] sm:$0xf]
        %v1864 = vld [vmem:[%s1856 + $0x28] sm:$0xf]
        %v1865 = vld [vmem:[%s1856 + $0x30] sm:$0xf]
        %v1866 = vld [vmem:[%s1856 + $0x34] sm:$0xf]
        %v1867 = vld [vmem:[%s1856 + $0x3c] sm:$0xf]
        %v1868 = vld [vmem:[%s1856 + $0x40] sm:$0xf]
        %v1869 = vld [vmem:[%s1856 + $0x48] sm:$0xf]
        %v1870 = vld [vmem:[%s1856 + $0x4c] sm:$0xf]
        %v1871 = vld [vmem:[%s1856 + $0x54] sm:$0xf]
        %v1872 = vld [vmem:[%s1856 + $0x58] sm:$0xf]
        %s1873 = scalar_lea.vmem [#allocation5], 12
        %v1874 = vld [vmem:[%s1873] sm:$0x3]
        %v1891 = vunpack.c.l.b16 %v1857
        %v1892 = vunpack.c.l.b16 %v1858
        %v1893 = vunpack.c.l.b16 %v1859
        %v1894 = vunpack.c.l.b16 %v1860
        %v1895 = vunpack.c.l.b16 %v1861
        %v1896 = vunpack.c.l.b16 %v1862
        %v1897 = vunpack.c.l.b16 %v1863
        %v1898 = vunpack.c.l.b16 %v1864
        %v1899 = vunpack.c.l.b16 %v1865
        %v1900 = vunpack.c.l.b16 %v1866
        %v1901 = vunpack.c.l.b16 %v1867
        %v1902 = vunpack.c.l.b16 %v1868
        %v1903 = vunpack.c.l.b16 %v1869
        %v1904 = vunpack.c.l.b16 %v1870
        %v1905 = vunpack.c.l.b16 %v1871
        %v1906 = vunpack.c.l.b16 %v1872
        %v1907 = vpack.c.b16 %v1892, %v1891
        %v1908 = vpack.c.b16 %v1894, %v1893
        %v1909 = vpack.c.b16 %v1896, %v1895
        %v1910 = vpack.c.b16 %v1898, %v1897
        %v1911 = vpack.c.b16 %v1900, %v1899
        %v1912 = vpack.c.b16 %v1902, %v1901
        %v1913 = vpack.c.b16 %v1904, %v1903
        %v1914 = vpack.c.b16 %v1906, %v1905
        %v1916 = vsel %vm482, %v1907, 0
        %v1919 = vsel %vm482, %v1908, 0
        %v1922 = vsel %vm482, %v1909, 0
        %v1925 = vsel %vm482, %v1910, 0
        %v1928 = vsel %vm482, %v1911, 0
        %v1931 = vsel %vm482, %v1912, 0
        %v1934 = vsel %vm482, %v1913, 0
        %v1937 = vsel %vm482, %v1914, 0
        %v1940 = vsel %vm507, %v1874, 0
        %1942 = vmatprep.subr.bf16.mxu0 0
        %1943 = vmatpush1.bf16.msra.mxu0 %v1940
        %1944 = vmatprep.subr.bf16.mxu0 0
        %1945 = vmatpush1.bf16.msra.mxu0 0
        %1946 = vmatprep.subr.bf16.mxu0 0
        %1947 = vmatpush1.bf16.msra.mxu0 0
        %1948 = vmatprep.subr.bf16.mxu0 0
        %1949 = vmatpush1.bf16.msra.mxu0 0
        %1950 = vmatprep.subr.bf16.mxu0 0
        %1951 = vmatpush1.bf16.msra.mxu0 0
        %1952 = vmatprep.subr.bf16.mxu0 0
        %1953 = vmatpush1.bf16.msra.mxu0 0
        %1954 = vmatprep.subr.bf16.mxu0 0
        %1955 = vmatpush1.bf16.msra.mxu0 0
        %1956 = vmatprep.subr.bf16.mxu0 0
        %1957 = vmatpush1.bf16.msra.mxu0 0
        %1958 = vmatprep.subr.bf16.mxu0 0
        %1959 = vmatpush1.bf16.msra.mxu0 0
        %1960 = vmatprep.subr.bf16.mxu0 0
        %1961 = vmatpush1.bf16.msra.mxu0 0
        %1962 = vmatprep.subr.bf16.mxu0 0
        %1963 = vmatpush1.bf16.msra.mxu0 0
        %1964 = vmatprep.subr.bf16.mxu0 0
        %1965 = vmatpush1.bf16.msra.mxu0 0
        %1966 = vmatprep.subr.bf16.mxu0 0
        %1967 = vmatpush1.bf16.msra.mxu0 0
        %1968 = vmatprep.subr.bf16.mxu0 0
        %1969 = vmatpush1.bf16.msra.mxu0 0
        %1970 = vmatprep.subr.bf16.mxu0 0
        %1971 = vmatpush1.bf16.msra.mxu0 0
        %1972 = vmatprep.subr.bf16.mxu0 0
        %1973 = vmatpush1.bf16.msra.mxu0 0
        %1974 = vmatprep.mubr.bf16.mxu0 0
        %1975 = vmatmul.mubr.bf16.gmra.mrb[0].mxu0 %v1916
        %v1976 = vpop.f32.mrb[0].mxu0
        %v1977 = vadd.f32 0.0, %v1976
        %v1978 = vpop.f32.mrb[0].mxu0
        %v1979 = vpop.f32.mrb[0].mxu0
        %v1980 = vadd.f32 0.0, %v1979
        %v1981 = vpop.f32.mrb[0].mxu0
        %1982 = vmatprep.mubr.bf16.mxu0 0
        %1983 = vmatmul.mubr.bf16.gmra.mrb[0].mxu0 %v1919
        %v1984 = vpop.f32.mrb[0].mxu0
        %v1985 = vadd.f32 0.0, %v1984
        %v1986 = vpop.f32.mrb[0].mxu0
        %v1987 = vpop.f32.mrb[0].mxu0
        %v1988 = vadd.f32 0.0, %v1987
        %v1989 = vpop.f32.mrb[0].mxu0
        %1990 = vmatprep.mubr.bf16.mxu0 0
        %1991 = vmatmul.mubr.bf16.gmra.mrb[0].mxu0 %v1922
        %v1992 = vpop.f32.mrb[0].mxu0
        %v1993 = vadd.f32 0.0, %v1992
        %v1994 = vpop.f32.mrb[0].mxu0
        %v1995 = vpop.f32.mrb[0].mxu0
        %v1996 = vadd.f32 0.0, %v1995
        %v1997 = vpop.f32.mrb[0].mxu0
        %1998 = vmatprep.mubr.bf16.mxu0 0
        %1999 = vmatmul.mubr.bf16.gmra.mrb[0].mxu0 %v1925
        %v2000 = vpop.f32.mrb[0].mxu0
        %v2001 = vadd.f32 0.0, %v2000
        %v2002 = vpop.f32.mrb[0].mxu0
        %v2003 = vpop.f32.mrb[0].mxu0
        %v2004 = vadd.f32 0.0, %v2003
        %v2005 = vpop.f32.mrb[0].mxu0
        %2006 = vmatprep.mubr.bf16.mxu0 0
        %2007 = vmatmul.mubr.bf16.gmra.mrb[0].mxu0 %v1928
        %v2008 = vpop.f32.mrb[0].mxu0
        %v2009 = vadd.f32 0.0, %v2008
        %v2010 = vpop.f32.mrb[0].mxu0
        %v2011 = vpop.f32.mrb[0].mxu0
        %v2012 = vadd.f32 0.0, %v2011
        %v2013 = vpop.f32.mrb[0].mxu0
        %2014 = vmatprep.mubr.bf16.mxu0 0
        %2015 = vmatmul.mubr.bf16.gmra.mrb[0].mxu0 %v1931
        %v2016 = vpop.f32.mrb[0].mxu0
        %v2017 = vadd.f32 0.0, %v2016
        %v2018 = vpop.f32.mrb[0].mxu0
        %v2019 = vpop.f32.mrb[0].mxu0
        %v2020 = vadd.f32 0.0, %v2019
        %v2021 = vpop.f32.mrb[0].mxu0
        %2022 = vmatprep.mubr.bf16.mxu0 0
        %2023 = vmatmul.mubr.bf16.gmra.mrb[0].mxu0 %v1934
        %v2024 = vpop.f32.mrb[0].mxu0
        %v2025 = vadd.f32 0.0, %v2024
        %v2026 = vpop.f32.mrb[0].mxu0
        %v2027 = vpop.f32.mrb[0].mxu0
        %v2028 = vadd.f32 0.0, %v2027
        %v2029 = vpop.f32.mrb[0].mxu0
        %2030 = vmatprep.mubr.bf16.mxu0 0
        %2031 = vmatmul.mubr.bf16.gmra.mrb[0].mxu0 %v1937
        %v2032 = vpop.f32.mrb[0].mxu0
        %v2033 = vadd.f32 0.0, %v2032
        %v2034 = vpop.f32.mrb[0].mxu0
        %v2035 = vpop.f32.mrb[0].mxu0
        %v2036 = vadd.f32 0.0, %v2035
        %v2037 = vpop.f32.mrb[0].mxu0
        %2038 = vdwg.mxu0
        %v2039 = vadd.f32 %v1840, %v1977
        %v2040 = vadd.f32 %v1841, %v1980
        %v2041 = vadd.f32 %v1842, %v1985
        %v2042 = vadd.f32 %v1843, %v1988
        %v2043 = vadd.f32 %v1844, %v1993
        %v2044 = vadd.f32 %v1845, %v1996
        %v2045 = vadd.f32 %v1846, %v2001
        %v2046 = vadd.f32 %v1847, %v2004
        %v2047 = vadd.f32 %v1848, %v2009
        %v2048 = vadd.f32 %v1849, %v2012
        %v2049 = vadd.f32 %v1850, %v2017
        %v2050 = vadd.f32 %v1851, %v2020
        %v2051 = vadd.f32 %v1852, %v2025
        %v2052 = vadd.f32 %v1853, %v2028
        %v2053 = vadd.f32 %v1854, %v2033
        %v2054 = vadd.f32 %v1855, %v2036
        %v2055 = vld [vmem:[%s1856] sm:$0xf]
        %v2056 = vld [vmem:[%s1856 + $0x4] sm:$0xf]
        %v2057 = vld [vmem:[%s1856 + $0x8] sm:$0x1]
        %v2058 = vld [vmem:[%s1856 + $0xc] sm:$0xf]
        %v2059 = vld [vmem:[%s1856 + $0x10] sm:$0xf]
        %v2060 = vld [vmem:[%s1856 + $0x14] sm:$0x1]
        %v2061 = vld [vmem:[%s1856 + $0x18] sm:$0xf]
        %v2062 = vld [vmem:[%s1856 + $0x1c] sm:$0xf]
        %v2063 = vld [vmem:[%s1856 + $0x20] sm:$0x1]
        %v2064 = vld [vmem:[%s1856 + $0x24] sm:$0xf]
        %v2065 = vld [vmem:[%s1856 + $0x28] sm:$0xf]
        %v2066 = vld [vmem:[%s1856 + $0x2c] sm:$0x1]
        %v2067 = vld [vmem:[%s1856 + $0x30] sm:$0xf]
        %v2068 = vld [vmem:[%s1856 + $0x34] sm:$0xf]
        %v2069 = vld [vmem:[%s1856 + $0x38] sm:$0x1]
        %v2070 = vld [vmem:[%s1856 + $0x3c] sm:$0xf]
        %v2071 = vld [vmem:[%s1856 + $0x40] sm:$0xf]
        %v2072 = vld [vmem:[%s1856 + $0x44] sm:$0x1]
        %v2073 = vld [vmem:[%s1856 + $0x48] sm:$0xf]
        %v2074 = vld [vmem:[%s1856 + $0x4c] sm:$0xf]
        %v2075 = vld [vmem:[%s1856 + $0x50] sm:$0x1]
        %v2076 = vld [vmem:[%s1856 + $0x54] sm:$0xf]
        %v2077 = vld [vmem:[%s1856 + $0x58] sm:$0xf]
        %v2078 = vld [vmem:[%s1856 + $0x5c] sm:$0x1]
        %v2080 = vshrl.u32 %v2055, 16
        %v2082 = vrot.slane %v2080, 4
        %v2083 = vshll.u32 %v2055, 16
        %v2085 = vrot.slane %v2083, 5
        %v2086 = vor.u32 %v2082, %v2085
        %v2087 = vrot.slane %v2086, 4
        %v2089 = vshll.u32 %v2056, 16
        %v2091 = vrot.slane %v2089, 5
        %v2092 = vsel %vm263, %v2087, %v2091
        %v2093 = vshrl.u32 %v2056, 16
        %v2095 = vrot.slane %v2093, 4
        %v2096 = vor.u32 %v2095, %v2091
        %v2097 = vrot.slane %v2096, 4
        %v2099 = vshll.u32 %v2057, 16
        %v2101 = vrot.slane %v2099, 5
        %v2102 = vsel %vm263, %v2097, %v2101
        %v2104 = vshrl.u32 %v2058, 16
        %v2106 = vrot.slane %v2104, 4
        %v2107 = vshll.u32 %v2058, 16
        %v2109 = vrot.slane %v2107, 5
        %v2110 = vor.u32 %v2106, %v2109
        %v2111 = vrot.slane %v2110, 4
        %v2113 = vshll.u32 %v2059, 16
        %v2115 = vrot.slane %v2113, 5
        %v2116 = vsel %vm263, %v2111, %v2115
        %v2117 = vshrl.u32 %v2059, 16
        %v2119 = vrot.slane %v2117, 4
        %v2120 = vor.u32 %v2119, %v2115
        %v2121 = vrot.slane %v2120, 4
        %v2123 = vshll.u32 %v2060, 16
        %v2125 = vrot.slane %v2123, 5
        %v2126 = vsel %vm263, %v2121, %v2125
        %v2128 = vshrl.u32 %v2061, 16
        %v2130 = vrot.slane %v2128, 4
        %v2131 = vshll.u32 %v2061, 16
        %v2133 = vrot.slane %v2131, 5
        %v2134 = vor.u32 %v2130, %v2133
        %v2135 = vrot.slane %v2134, 4
        %v2137 = vshll.u32 %v2062, 16
        %v2139 = vrot.slane %v2137, 5
        %v2140 = vsel %vm263, %v2135, %v2139
        %v2141 = vshrl.u32 %v2062, 16
        %v2143 = vrot.slane %v2141, 4
        %v2144 = vor.u32 %v2143, %v2139
        %v2145 = vrot.slane %v2144, 4
        %v2147 = vshll.u32 %v2063, 16
        %v2149 = vrot.slane %v2147, 5
        %v2150 = vsel %vm263, %v2145, %v2149
        %v2152 = vshrl.u32 %v2064, 16
        %v2154 = vrot.slane %v2152, 4
        %v2155 = vshll.u32 %v2064, 16
        %v2157 = vrot.slane %v2155, 5
        %v2158 = vor.u32 %v2154, %v2157
        %v2159 = vrot.slane %v2158, 4
        %v2161 = vshll.u32 %v2065, 16
        %v2163 = vrot.slane %v2161, 5
        %v2164 = vsel %vm263, %v2159, %v2163
        %v2165 = vshrl.u32 %v2065, 16
        %v2167 = vrot.slane %v2165, 4
        %v2168 = vor.u32 %v2167, %v2163
        %v2169 = vrot.slane %v2168, 4
        %v2171 = vshll.u32 %v2066, 16
        %v2173 = vrot.slane %v2171, 5
        %v2174 = vsel %vm263, %v2169, %v2173
        %v2176 = vshrl.u32 %v2067, 16
        %v2178 = vrot.slane %v2176, 4
        %v2179 = vshll.u32 %v2067, 16
        %v2181 = vrot.slane %v2179, 5
        %v2182 = vor.u32 %v2178, %v2181
        %v2183 = vrot.slane %v2182, 4
        %v2185 = vshll.u32 %v2068, 16
        %v2187 = vrot.slane %v2185, 5
        %v2188 = vsel %vm263, %v2183, %v2187
        %v2189 = vshrl.u32 %v2068, 16
        %v2191 = vrot.slane %v2189, 4
        %v2192 = vor.u32 %v2191, %v2187
        %v2193 = vrot.slane %v2192, 4
        %v2195 = vshll.u32 %v2069, 16
        %v2197 = vrot.slane %v2195, 5
        %v2198 = vsel %vm263, %v2193, %v2197
        %v2200 = vshrl.u32 %v2070, 16
        %v2202 = vrot.slane %v2200, 4
        %v2203 = vshll.u32 %v2070, 16
        %v2205 = vrot.slane %v2203, 5
        %v2206 = vor.u32 %v2202, %v2205
        %v2207 = vrot.slane %v2206, 4
        %v2209 = vshll.u32 %v2071, 16
        %v2211 = vrot.slane %v2209, 5
        %v2212 = vsel %vm263, %v2207, %v2211
        %v2213 = vshrl.u32 %v2071, 16
        %v2215 = vrot.slane %v2213, 4
        %v2216 = vor.u32 %v2215, %v2211
        %v2217 = vrot.slane %v2216, 4
        %v2219 = vshll.u32 %v2072, 16
        %v2221 = vrot.slane %v2219, 5
        %v2222 = vsel %vm263, %v2217, %v2221
        %v2224 = vshrl.u32 %v2073, 16
        %v2226 = vrot.slane %v2224, 4
        %v2227 = vshll.u32 %v2073, 16
        %v2229 = vrot.slane %v2227, 5
        %v2230 = vor.u32 %v2226, %v2229
        %v2231 = vrot.slane %v2230, 4
        %v2233 = vshll.u32 %v2074, 16
        %v2235 = vrot.slane %v2233, 5
        %v2236 = vsel %vm263, %v2231, %v2235
        %v2237 = vshrl.u32 %v2074, 16
        %v2239 = vrot.slane %v2237, 4
        %v2240 = vor.u32 %v2239, %v2235
        %v2241 = vrot.slane %v2240, 4
        %v2243 = vshll.u32 %v2075, 16
        %v2245 = vrot.slane %v2243, 5
        %v2246 = vsel %vm263, %v2241, %v2245
        %v2248 = vshrl.u32 %v2076, 16
        %v2250 = vrot.slane %v2248, 4
        %v2251 = vshll.u32 %v2076, 16
        %v2253 = vrot.slane %v2251, 5
        %v2254 = vor.u32 %v2250, %v2253
        %v2255 = vrot.slane %v2254, 4
        %v2257 = vshll.u32 %v2077, 16
        %v2259 = vrot.slane %v2257, 5
        %v2260 = vsel %vm263, %v2255, %v2259
        %v2261 = vshrl.u32 %v2077, 16
        %v2263 = vrot.slane %v2261, 4
        %v2264 = vor.u32 %v2263, %v2259
        %v2265 = vrot.slane %v2264, 4
        %v2267 = vshll.u32 %v2078, 16
        %v2269 = vrot.slane %v2267, 5
        %v2270 = vsel %vm263, %v2265, %v2269
        %s2271 = scalar_lea.vmem [#allocation5], 14
        %v2272 = vld [vmem:[%s2271] sm:$0x3]
        %v2273 = vunpack.c.l.b16 %v2092
        %v2274 = vunpack.c.l.b16 %v2102
        %v2275 = vunpack.c.l.b16 %v2116
        %v2276 = vunpack.c.l.b16 %v2126
        %v2277 = vunpack.c.l.b16 %v2140
        %v2278 = vunpack.c.l.b16 %v2150
        %v2279 = vunpack.c.l.b16 %v2164
        %v2280 = vunpack.c.l.b16 %v2174
        %v2281 = vunpack.c.l.b16 %v2188
        %v2282 = vunpack.c.l.b16 %v2198
        %v2283 = vunpack.c.l.b16 %v2212
        %v2284 = vunpack.c.l.b16 %v2222
        %v2285 = vunpack.c.l.b16 %v2236
        %v2286 = vunpack.c.l.b16 %v2246
        %v2287 = vunpack.c.l.b16 %v2260
        %v2288 = vunpack.c.l.b16 %v2270
        %v2289 = vpack.c.b16 %v2274, %v2273
        %v2290 = vpack.c.b16 %v2276, %v2275
        %v2291 = vpack.c.b16 %v2278, %v2277
        %v2292 = vpack.c.b16 %v2280, %v2279
        %v2293 = vpack.c.b16 %v2282, %v2281
        %v2294 = vpack.c.b16 %v2284, %v2283
        %v2295 = vpack.c.b16 %v2286, %v2285
        %v2296 = vpack.c.b16 %v2288, %v2287
        %v2298 = vsel %vm482, %v2289, 0
        %v2301 = vsel %vm482, %v2290, 0
        %v2304 = vsel %vm482, %v2291, 0
        %v2307 = vsel %vm482, %v2292, 0
        %v2310 = vsel %vm482, %v2293, 0
        %v2313 = vsel %vm482, %v2294, 0
        %v2316 = vsel %vm482, %v2295, 0
        %v2319 = vsel %vm482, %v2296, 0
        %v2322 = vsel %vm507, %v2272, 0
        %2324 = vmatprep.subr.bf16.mxu0 0
        %2325 = vmatpush1.bf16.msra.mxu0 %v2322
        %2326 = vmatprep.subr.bf16.mxu0 0
        %2327 = vmatpush1.bf16.msra.mxu0 0
        %2328 = vmatprep.subr.bf16.mxu0 0
        %2329 = vmatpush1.bf16.msra.mxu0 0
        %2330 = vmatprep.subr.bf16.mxu0 0
        %2331 = vmatpush1.bf16.msra.mxu0 0
        %2332 = vmatprep.subr.bf16.mxu0 0
        %2333 = vmatpush1.bf16.msra.mxu0 0
        %2334 = vmatprep.subr.bf16.mxu0 0
        %2335 = vmatpush1.bf16.msra.mxu0 0
        %2336 = vmatprep.subr.bf16.mxu0 0
        %2337 = vmatpush1.bf16.msra.mxu0 0
        %2338 = vmatprep.subr.bf16.mxu0 0
        %2339 = vmatpush1.bf16.msra.mxu0 0
        %2340 = vmatprep.subr.bf16.mxu0 0
        %2341 = vmatpush1.bf16.msra.mxu0 0
        %2342 = vmatprep.subr.bf16.mxu0 0
        %2343 = vmatpush1.bf16.msra.mxu0 0
        %2344 = vmatprep.subr.bf16.mxu0 0
        %2345 = vmatpush1.bf16.msra.mxu0 0
        %2346 = vmatprep.subr.bf16.mxu0 0
        %2347 = vmatpush1.bf16.msra.mxu0 0
        %2348 = vmatprep.subr.bf16.mxu0 0
        %2349 = vmatpush1.bf16.msra.mxu0 0
        %2350 = vmatprep.subr.bf16.mxu0 0
        %2351 = vmatpush1.bf16.msra.mxu0 0
        %2352 = vmatprep.subr.bf16.mxu0 0
        %2353 = vmatpush1.bf16.msra.mxu0 0
        %2354 = vmatprep.subr.bf16.mxu0 0
        %2355 = vmatpush1.bf16.msra.mxu0 0
        %2356 = vmatprep.mubr.bf16.mxu0 0
        %2357 = vmatmul.mubr.bf16.gmra.mrb[0].mxu0 %v2298
        %v2358 = vpop.f32.mrb[0].mxu0
        %v2359 = vadd.f32 0.0, %v2358
        %v2360 = vpop.f32.mrb[0].mxu0
        %v2361 = vpop.f32.mrb[0].mxu0
        %v2362 = vadd.f32 0.0, %v2361
        %v2363 = vpop.f32.mrb[0].mxu0
        %2364 = vmatprep.mubr.bf16.mxu0 0
        %2365 = vmatmul.mubr.bf16.gmra.mrb[0].mxu0 %v2301
        %v2366 = vpop.f32.mrb[0].mxu0
        %v2367 = vadd.f32 0.0, %v2366
        %v2368 = vpop.f32.mrb[0].mxu0
        %v2369 = vpop.f32.mrb[0].mxu0
        %v2370 = vadd.f32 0.0, %v2369
        %v2371 = vpop.f32.mrb[0].mxu0
        %2372 = vmatprep.mubr.bf16.mxu0 0
        %2373 = vmatmul.mubr.bf16.gmra.mrb[0].mxu0 %v2304
        %v2374 = vpop.f32.mrb[0].mxu0
        %v2375 = vadd.f32 0.0, %v2374
        %v2376 = vpop.f32.mrb[0].mxu0
        %v2377 = vpop.f32.mrb[0].mxu0
        %v2378 = vadd.f32 0.0, %v2377
        %v2379 = vpop.f32.mrb[0].mxu0
        %2380 = vmatprep.mubr.bf16.mxu0 0
        %2381 = vmatmul.mubr.bf16.gmra.mrb[0].mxu0 %v2307
        %v2382 = vpop.f32.mrb[0].mxu0
        %v2383 = vadd.f32 0.0, %v2382
        %v2384 = vpop.f32.mrb[0].mxu0
        %v2385 = vpop.f32.mrb[0].mxu0
        %v2386 = vadd.f32 0.0, %v2385
        %v2387 = vpop.f32.mrb[0].mxu0
        %2388 = vmatprep.mubr.bf16.mxu0 0
        %2389 = vmatmul.mubr.bf16.gmra.mrb[0].mxu0 %v2310
        %v2390 = vpop.f32.mrb[0].mxu0
        %v2391 = vadd.f32 0.0, %v2390
        %v2392 = vpop.f32.mrb[0].mxu0
        %v2393 = vpop.f32.mrb[0].mxu0
        %v2394 = vadd.f32 0.0, %v2393
        %v2395 = vpop.f32.mrb[0].mxu0
        %2396 = vmatprep.mubr.bf16.mxu0 0
        %2397 = vmatmul.mubr.bf16.gmra.mrb[0].mxu0 %v2313
        %v2398 = vpop.f32.mrb[0].mxu0
        %v2399 = vadd.f32 0.0, %v2398
        %v2400 = vpop.f32.mrb[0].mxu0
        %v2401 = vpop.f32.mrb[0].mxu0
        %v2402 = vadd.f32 0.0, %v2401
        %v2403 = vpop.f32.mrb[0].mxu0
        %2404 = vmatprep.mubr.bf16.mxu0 0
        %2405 = vmatmul.mubr.bf16.gmra.mrb[0].mxu0 %v2316
        %v2406 = vpop.f32.mrb[0].mxu0
        %v2407 = vadd.f32 0.0, %v2406
        %v2408 = vpop.f32.mrb[0].mxu0
        %v2409 = vpop.f32.mrb[0].mxu0
        %v2410 = vadd.f32 0.0, %v2409
        %v2411 = vpop.f32.mrb[0].mxu0
        %2412 = vmatprep.mubr.bf16.mxu0 0
        %2413 = vmatmul.mubr.bf16.gmra.mrb[0].mxu0 %v2319
        %v2414 = vpop.f32.mrb[0].mxu0
        %v2415 = vadd.f32 0.0, %v2414
        %v2416 = vpop.f32.mrb[0].mxu0
        %v2417 = vpop.f32.mrb[0].mxu0
        %v2418 = vadd.f32 0.0, %v2417
        %v2419 = vpop.f32.mrb[0].mxu0
        %2420 = vdwg.mxu0
        %v2421 = vadd.f32 %v2039, %v2359
        %v2422 = vadd.f32 %v2040, %v2362
        %v2423 = vadd.f32 %v2041, %v2367
        %v2424 = vadd.f32 %v2042, %v2370
        %v2425 = vadd.f32 %v2043, %v2375
        %v2426 = vadd.f32 %v2044, %v2378
        %v2427 = vadd.f32 %v2045, %v2383
        %v2428 = vadd.f32 %v2046, %v2386
        %v2429 = vadd.f32 %v2047, %v2391
        %v2430 = vadd.f32 %v2048, %v2394
        %v2431 = vadd.f32 %v2049, %v2399
        %v2432 = vadd.f32 %v2050, %v2402
        %v2433 = vadd.f32 %v2051, %v2407
        %v2434 = vadd.f32 %v2052, %v2410
        %v2435 = vadd.f32 %v2053, %v2415
        %v2436 = vadd.f32 %v2054, %v2418
        %v2437 = vld [vmem:[%s1856] sm:$0xe]
        %v2438 = vld [vmem:[%s1856 + $0xc] sm:$0xe]
        %v2439 = vld [vmem:[%s1856 + $0x18] sm:$0xe]
        %v2440 = vld [vmem:[%s1856 + $0x24] sm:$0xe]
        %v2441 = vld [vmem:[%s1856 + $0x30] sm:$0xe]
        %v2442 = vld [vmem:[%s1856 + $0x3c] sm:$0xe]
        %v2443 = vld [vmem:[%s1856 + $0x48] sm:$0xe]
        %v2444 = vld [vmem:[%s1856 + $0x54] sm:$0xe]
        %v2469 = vrot.slane %v2437, 5
        %v2470 = vrot.slane %v2469, 4
        %v2471 = vrot.slane %v2056, 5
        %v2472 = vsel %vm798, %v2470, %v2471
        %v2473 = vrot.slane %v2471, 4
        %v2474 = vrot.slane %v2057, 5
        %v2475 = vsel %vm798, %v2473, %v2474
        %v2476 = vrot.slane %v2438, 5
        %v2477 = vrot.slane %v2476, 4
        %v2478 = vrot.slane %v2059, 5
        %v2479 = vsel %vm798, %v2477, %v2478
        %v2480 = vrot.slane %v2478, 4
        %v2481 = vrot.slane %v2060, 5
        %v2482 = vsel %vm798, %v2480, %v2481
        %v2483 = vrot.slane %v2439, 5
        %v2484 = vrot.slane %v2483, 4
        %v2485 = vrot.slane %v2062, 5
        %v2486 = vsel %vm798, %v2484, %v2485
        %v2487 = vrot.slane %v2485, 4
        %v2488 = vrot.slane %v2063, 5
        %v2489 = vsel %vm798, %v2487, %v2488
        %v2490 = vrot.slane %v2440, 5
        %v2491 = vrot.slane %v2490, 4
        %v2492 = vrot.slane %v2065, 5
        %v2493 = vsel %vm798, %v2491, %v2492
        %v2494 = vrot.slane %v2492, 4
        %v2495 = vrot.slane %v2066, 5
        %v2496 = vsel %vm798, %v2494, %v2495
        %v2497 = vrot.slane %v2441, 5
        %v2498 = vrot.slane %v2497, 4
        %v2499 = vrot.slane %v2068, 5
        %v2500 = vsel %vm798, %v2498, %v2499
        %v2501 = vrot.slane %v2499, 4
        %v2502 = vrot.slane %v2069, 5
        %v2503 = vsel %vm798, %v2501, %v2502
        %v2504 = vrot.slane %v2442, 5
        %v2505 = vrot.slane %v2504, 4
        %v2506 = vrot.slane %v2071, 5
        %v2507 = vsel %vm798, %v2505, %v2506
        %v2508 = vrot.slane %v2506, 4
        %v2509 = vrot.slane %v2072, 5
        %v2510 = vsel %vm798, %v2508, %v2509
        %v2511 = vrot.slane %v2443, 5
        %v2512 = vrot.slane %v2511, 4
        %v2513 = vrot.slane %v2074, 5
        %v2514 = vsel %vm798, %v2512, %v2513
        %v2515 = vrot.slane %v2513, 4
        %v2516 = vrot.slane %v2075, 5
        %v2517 = vsel %vm798, %v2515, %v2516
        %v2518 = vrot.slane %v2444, 5
        %v2519 = vrot.slane %v2518, 4
        %v2520 = vrot.slane %v2077, 5
        %v2521 = vsel %vm798, %v2519, %v2520
        %v2522 = vrot.slane %v2520, 4
        %v2523 = vrot.slane %v2078, 5
        %v2524 = vsel %vm798, %v2522, %v2523
        %s2525 = scalar_lea.vmem [#allocation5], 16
        %v2526 = vld [vmem:[%s2525] sm:$0x3]
        %v2527 = vunpack.c.l.b16 %v2472
        %v2528 = vunpack.c.l.b16 %v2475
        %v2529 = vunpack.c.l.b16 %v2479
        %v2530 = vunpack.c.l.b16 %v2482
        %v2531 = vunpack.c.l.b16 %v2486
        %v2532 = vunpack.c.l.b16 %v2489
        %v2533 = vunpack.c.l.b16 %v2493
        %v2534 = vunpack.c.l.b16 %v2496
        %v2535 = vunpack.c.l.b16 %v2500
        %v2536 = vunpack.c.l.b16 %v2503
        %v2537 = vunpack.c.l.b16 %v2507
        %v2538 = vunpack.c.l.b16 %v2510
        %v2539 = vunpack.c.l.b16 %v2514
        %v2540 = vunpack.c.l.b16 %v2517
        %v2541 = vunpack.c.l.b16 %v2521
        %v2542 = vunpack.c.l.b16 %v2524
        %v2543 = vpack.c.b16 %v2528, %v2527
        %v2544 = vpack.c.b16 %v2530, %v2529
        %v2545 = vpack.c.b16 %v2532, %v2531
        %v2546 = vpack.c.b16 %v2534, %v2533
        %v2547 = vpack.c.b16 %v2536, %v2535
        %v2548 = vpack.c.b16 %v2538, %v2537
        %v2549 = vpack.c.b16 %v2540, %v2539
        %v2550 = vpack.c.b16 %v2542, %v2541
        %v2552 = vsel %vm482, %v2543, 0
        %v2555 = vsel %vm482, %v2544, 0
        %v2558 = vsel %vm482, %v2545, 0
        %v2561 = vsel %vm482, %v2546, 0
        %v2564 = vsel %vm482, %v2547, 0
        %v2567 = vsel %vm482, %v2548, 0
        %v2570 = vsel %vm482, %v2549, 0
        %v2573 = vsel %vm482, %v2550, 0
        %v2576 = vsel %vm507, %v2526, 0
        %2578 = vmatprep.subr.bf16.mxu0 0
        %2579 = vmatpush1.bf16.msra.mxu0 %v2576
        %2580 = vmatprep.subr.bf16.mxu0 0
        %2581 = vmatpush1.bf16.msra.mxu0 0
        %2582 = vmatprep.subr.bf16.mxu0 0
        %2583 = vmatpush1.bf16.msra.mxu0 0
        %2584 = vmatprep.subr.bf16.mxu0 0
        %2585 = vmatpush1.bf16.msra.mxu0 0
        %2586 = vmatprep.subr.bf16.mxu0 0
        %2587 = vmatpush1.bf16.msra.mxu0 0
        %2588 = vmatprep.subr.bf16.mxu0 0
        %2589 = vmatpush1.bf16.msra.mxu0 0
        %2590 = vmatprep.subr.bf16.mxu0 0
        %2591 = vmatpush1.bf16.msra.mxu0 0
        %2592 = vmatprep.subr.bf16.mxu0 0
        %2593 = vmatpush1.bf16.msra.mxu0 0
        %2594 = vmatprep.subr.bf16.mxu0 0
        %2595 = vmatpush1.bf16.msra.mxu0 0
        %2596 = vmatprep.subr.bf16.mxu0 0
        %2597 = vmatpush1.bf16.msra.mxu0 0
        %2598 = vmatprep.subr.bf16.mxu0 0
        %2599 = vmatpush1.bf16.msra.mxu0 0
        %2600 = vmatprep.subr.bf16.mxu0 0
        %2601 = vmatpush1.bf16.msra.mxu0 0
        %2602 = vmatprep.subr.bf16.mxu0 0
        %2603 = vmatpush1.bf16.msra.mxu0 0
        %2604 = vmatprep.subr.bf16.mxu0 0
        %2605 = vmatpush1.bf16.msra.mxu0 0
        %2606 = vmatprep.subr.bf16.mxu0 0
        %2607 = vmatpush1.bf16.msra.mxu0 0
        %2608 = vmatprep.subr.bf16.mxu0 0
        %2609 = vmatpush1.bf16.msra.mxu0 0
        %2610 = vmatprep.mubr.bf16.mxu0 0
        %2611 = vmatmul.mubr.bf16.gmra.mrb[0].mxu0 %v2552
        %v2612 = vpop.f32.mrb[0].mxu0
        %v2613 = vadd.f32 0.0, %v2612
        %v2614 = vpop.f32.mrb[0].mxu0
        %v2615 = vpop.f32.mrb[0].mxu0
        %v2616 = vadd.f32 0.0, %v2615
        %v2617 = vpop.f32.mrb[0].mxu0
        %2618 = vmatprep.mubr.bf16.mxu0 0
        %2619 = vmatmul.mubr.bf16.gmra.mrb[0].mxu0 %v2555
        %v2620 = vpop.f32.mrb[0].mxu0
        %v2621 = vadd.f32 0.0, %v2620
        %v2622 = vpop.f32.mrb[0].mxu0
        %v2623 = vpop.f32.mrb[0].mxu0
        %v2624 = vadd.f32 0.0, %v2623
        %v2625 = vpop.f32.mrb[0].mxu0
        %2626 = vmatprep.mubr.bf16.mxu0 0
        %2627 = vmatmul.mubr.bf16.gmra.mrb[0].mxu0 %v2558
        %v2628 = vpop.f32.mrb[0].mxu0
        %v2629 = vadd.f32 0.0, %v2628
        %v2630 = vpop.f32.mrb[0].mxu0
        %v2631 = vpop.f32.mrb[0].mxu0
        %v2632 = vadd.f32 0.0, %v2631
        %v2633 = vpop.f32.mrb[0].mxu0
        %2634 = vmatprep.mubr.bf16.mxu0 0
        %2635 = vmatmul.mubr.bf16.gmra.mrb[0].mxu0 %v2561
        %v2636 = vpop.f32.mrb[0].mxu0
        %v2637 = vadd.f32 0.0, %v2636
        %v2638 = vpop.f32.mrb[0].mxu0
        %v2639 = vpop.f32.mrb[0].mxu0
        %v2640 = vadd.f32 0.0, %v2639
        %v2641 = vpop.f32.mrb[0].mxu0
        %2642 = vmatprep.mubr.bf16.mxu0 0
        %2643 = vmatmul.mubr.bf16.gmra.mrb[0].mxu0 %v2564
        %v2644 = vpop.f32.mrb[0].mxu0
        %v2645 = vadd.f32 0.0, %v2644
        %v2646 = vpop.f32.mrb[0].mxu0
        %v2647 = vpop.f32.mrb[0].mxu0
        %v2648 = vadd.f32 0.0, %v2647
        %v2649 = vpop.f32.mrb[0].mxu0
        %2650 = vmatprep.mubr.bf16.mxu0 0
        %2651 = vmatmul.mubr.bf16.gmra.mrb[0].mxu0 %v2567
        %v2652 = vpop.f32.mrb[0].mxu0
        %v2653 = vadd.f32 0.0, %v2652
        %v2654 = vpop.f32.mrb[0].mxu0
        %v2655 = vpop.f32.mrb[0].mxu0
        %v2656 = vadd.f32 0.0, %v2655
        %v2657 = vpop.f32.mrb[0].mxu0
        %2658 = vmatprep.mubr.bf16.mxu0 0
        %2659 = vmatmul.mubr.bf16.gmra.mrb[0].mxu0 %v2570
        %v2660 = vpop.f32.mrb[0].mxu0
        %v2661 = vadd.f32 0.0, %v2660
        %v2662 = vpop.f32.mrb[0].mxu0
        %v2663 = vpop.f32.mrb[0].mxu0
        %v2664 = vadd.f32 0.0, %v2663
        %v2665 = vpop.f32.mrb[0].mxu0
        %2666 = vmatprep.mubr.bf16.mxu0 0
        %2667 = vmatmul.mubr.bf16.gmra.mrb[0].mxu0 %v2573
        %v2668 = vpop.f32.mrb[0].mxu0
        %v2669 = vadd.f32 0.0, %v2668
        %v2670 = vpop.f32.mrb[0].mxu0
        %v2671 = vpop.f32.mrb[0].mxu0
        %v2672 = vadd.f32 0.0, %v2671
        %v2673 = vpop.f32.mrb[0].mxu0
        %2674 = vdwg.mxu0
        %v2675 = vadd.f32 %v2421, %v2613
        %v2676 = vadd.f32 %v2422, %v2616
        %v2677 = vadd.f32 %v2423, %v2621
        %v2678 = vadd.f32 %v2424, %v2624
        %v2679 = vadd.f32 %v2425, %v2629
        %v2680 = vadd.f32 %v2426, %v2632
        %v2681 = vadd.f32 %v2427, %v2637
        %v2682 = vadd.f32 %v2428, %v2640
        %v2683 = vadd.f32 %v2429, %v2645
        %v2684 = vadd.f32 %v2430, %v2648
        %v2685 = vadd.f32 %v2431, %v2653
        %v2686 = vadd.f32 %v2432, %v2656
        %v2687 = vadd.f32 %v2433, %v2661
        %v2688 = vadd.f32 %v2434, %v2664
        %v2689 = vadd.f32 %v2435, %v2669
        %v2690 = vadd.f32 %v2436, %v2672
        %v2691 = vld [vmem:[#allocation7] sm:$0x1]
        %v2693 = vlaneseq
        %v2694 = vshrl.u32 %v2693, 7
        %v2695 = vsub.s32 0, %v2694
        %v2696 = vrot.slane %v2691, %v2695
        %v2698 = vadd.f32 %v2675, %v2696
        %v2699 = vadd.f32 %v2676, %v2696
        %v2700 = vadd.f32 %v2677, %v2696
        %v2701 = vadd.f32 %v2678, %v2696
        %v2702 = vadd.f32 %v2679, %v2696
        %v2703 = vadd.f32 %v2680, %v2696
        %v2704 = vadd.f32 %v2681, %v2696
        %v2705 = vadd.f32 %v2682, %v2696
        %v2706 = vadd.f32 %v2683, %v2696
        %v2707 = vadd.f32 %v2684, %v2696
        %v2708 = vadd.f32 %v2685, %v2696
        %v2709 = vadd.f32 %v2686, %v2696
        %v2710 = vadd.f32 %v2687, %v2696
        %v2711 = vadd.f32 %v2688, %v2696
        %v2712 = vadd.f32 %v2689, %v2696
        %v2713 = vadd.f32 %v2690, %v2696
        %vm2714 = vcmask 130048
        %2715 = vst.msk [vmem:[%s233] sm:$0xff] %vm2714, %v2698
        %2716 = vst.msk [vmem:[%s233 + $0x8] sm:$0xff] %vm2714, %v2699
        %2717 = vst.msk [vmem:[%s233 + $0x10] sm:$0xff] %vm2714, %v2700
        %2718 = vst.msk [vmem:[%s233 + $0x18] sm:$0xff] %vm2714, %v2701
        %2719 = vst.msk [vmem:[%s233 + $0x20] sm:$0xff] %vm2714, %v2702
        %2720 = vst.msk [vmem:[%s233 + $0x28] sm:$0xff] %vm2714, %v2703
        %2721 = vst.msk [vmem:[%s233 + $0x30] sm:$0xff] %vm2714, %v2704
        %2722 = vst.msk [vmem:[%s233 + $0x38] sm:$0xff] %vm2714, %v2705
        %2723 = vst.msk [vmem:[%s233 + $0x40] sm:$0xff] %vm2714, %v2706
        %2724 = vst.msk [vmem:[%s233 + $0x48] sm:$0xff] %vm2714, %v2707
        %2725 = vst.msk [vmem:[%s233 + $0x50] sm:$0xff] %vm2714, %v2708
        %2726 = vst.msk [vmem:[%s233 + $0x58] sm:$0xff] %vm2714, %v2709
        %2727 = vst.msk [vmem:[%s233 + $0x60] sm:$0xff] %vm2714, %v2710
        %2728 = vst.msk [vmem:[%s233 + $0x68] sm:$0xff] %vm2714, %v2711
        %2729 = vst.msk [vmem:[%s233 + $0x70] sm:$0xff] %vm2714, %v2712
        %2730 = vst.msk [vmem:[%s233 + $0x78] sm:$0xff] %vm2714, %v2713
        %s2731 = sand.u32 %s113, 1
        %s2732 = scalar_lea.sflag [#allocation4], %s2731
        %s2733 = sand.u32 %s113, 1
        %s2734 = smul.addr %s2733, 128
        %s2735 = scalar_lea.vmem [#allocation8], %s2734
        // Predicated region
        $region45: #{upsample_forward.1} parent=31 // pred_check
          %p2736 = pneg %p123
        $region46: #{upsample_forward.1} parent=31 // pred_check_branch
          %2738 = sbr.rel (%p2736) target = $region48
        $region47: #{upsample_forward.1} parent=31 // pred_region
          %s2739 = smul.u32 16, %s26
          %s2741 = ssub.s32 2048, 2048
          %2742 = vsyncadd %s2732, %s2741
          %s2743 = smul.addr %s25, 32
          %s2744 = sadd.s32 %s2739, %s2743
          %s2745 = smul.addr %s2744, 128
          %s2746 = scalar_lea.hbm %s3, %s2745
          %s2747 = sshll.u32 %s2735, 4
          %s2748 = int_to_ptr.vmem [resolvable:$true] %s2747
          %2753 = dma.vmem_to_hbm [thread:$0]  %s2748, 2048, %s2746, %s2732, 128, 128, 8
        $region48: #{upsample_forward.1} parent=31 // pred_fallthru
          _
      $region32: #{upsample_forward.1} parent=5 // pred_fallthru
        _
      %p2754 = scmp.le.s32.totalorder 2, %s16
      // Predicated region
      $region49: #{upsample_forward.1} parent=5 // pred_check
        %p2755 = pneg %p2754
      $region50: #{upsample_forward.1} parent=5 // pred_check_branch
        %2757 = sbr.rel (%p2755) target = $region52
      $region51: #{upsample_forward.1} parent=5 // pred_region
        %s2758 = ssub.s32 %s16, 2
        // Predicated region
        $region53: #{upsample_forward.1} parent=51 // pred_check
          %p2759 = pneg %p129
        $region54: #{upsample_forward.1} parent=51 // pred_check_branch
          %2761 = sbr.rel (%p2759) target = $region56
        $region55: #{upsample_forward.1} parent=51 // pred_region
          %s2762 = sand.u32 %s114, 1
          %s2763 = scalar_lea.sflag [#allocation4], %s2762
          %s2764 = sand.u32 %s114, 1
          %s2765 = smul.addr %s2764, 128
          %s2766 = scalar_lea.vmem [#allocation8], %s2765
          %2767 = dma.done %s2763, 2048
        $region56: #{upsample_forward.1} parent=51 // pred_fallthru
          _
      $region52: #{upsample_forward.1} parent=5 // pred_fallthru
        _
    $region6: #{upsample_forward.1} parent=1 // loop_footer
      %s20 = sadd.s32 1, %s16
    $region7: #{upsample_forward.1} parent=1 // loop_footer_branch
      %15 = sbr.rel target = $region3
    $region8: #{upsample_forward.1} parent=1 // loop_exit
      _
    %2768 = vsyncpa [#allocation3], 1
    %s2769 = scalar_lea.sflag [#allocation3], 1
    %2770 = vsyncpa %s2769, 1
    %2771 = vsyncpa [#allocation6], 1
    %2772 = vsyncpa [#allocation4], 1
    %s2773 = scalar_lea.sflag [#allocation4], 1
    %2774 = vsyncpa %s2773, 1

</llo_original>
